<compile_context>
chip_gen: v6e
topology: v6e:2x2x1
jax: 0.10.0
libtpu: 0.0.40
codegen_flags: <defaults>
</compile_context>

<pallas_src>
from functools import partial

import jax
import jax.numpy as jnp
from jax.experimental import pallas as pl
from jax.experimental.pallas import tpu as pltpu


def lpd_kernel(src_ref, dst_ref,
               w1_ref, b1_ref, w2_ref, b2_ref, w3_ref, b3_ref,
               out_ref, *, L, C):
    # src/dst: (L*C, TE) feature-major, row = layer*C + channel, edges on lanes.
    src = src_ref[...]
    dst = dst_ref[...]
    w1 = w1_ref[...]                                   # (H, L*L*C)

    # First Linear fused with the cross-layer product:
    #   x1 = sum_{i,j} W1[:, (i*L+j)*C : (i*L+j+1)*C] @ (src_i * dst_j) + b1
    acc = None
    for i in range(L):
        si = src[i * C:(i + 1) * C, :]                 # (C, TE)
        for j in range(L):
            prod = si * dst[j * C:(j + 1) * C, :]      # (C, TE)
            blk = (i * L + j) * C
            term = jnp.dot(w1[:, blk:blk + C], prod,
                           preferred_element_type=jnp.float32)
            acc = term if acc is None else acc + term
    x = jnp.maximum(acc + b1_ref[...], 0.0)            # (H, TE)

    # Hidden Linear -> ReLU   (dropout: eval-mode identity)
    x = jnp.dot(w2_ref[...], x, preferred_element_type=jnp.float32) + b2_ref[...]
    x = jnp.maximum(x, 0.0)

    # Output Linear -> sigmoid, stored lane-dense as (O, TE)
    x = jnp.dot(w3_ref[...], x, preferred_element_type=jnp.float32) + b3_ref[...]
    out_ref[...] = jax.nn.sigmoid(x)


def lpd_forward(h, edge, params, *, tile_e=512):
    """h: [L, N, C] float32, edge: [2, E] int32, params: torch-layout weights.

    params: W1 [H, L*L*C], b1 [H], W2 [H, H], b2 [H], W3 [O, H], b3 [O].
    Returns [E, O] float32.
    """
    L, N, C = h.shape
    E = edge.shape[1]

    # Pad the edge list so E is a multiple of tile_e (node 0 is a valid pad).
    Ep = tile_e * pl.cdiv(E, tile_e)
    if Ep != E:
        edge = jnp.pad(edge, ((0, 0), (0, Ep - E)))

    # Gather + pack feature-major: (L*C, Ep), row index = layer*C + channel.
    src_t = jnp.transpose(h[:, edge[0], :], (0, 2, 1)).reshape(L * C, Ep)
    dst_t = jnp.transpose(h[:, edge[1], :], (0, 2, 1)).reshape(L * C, Ep)

    W1, b1 = params["W1"], params["b1"].reshape(-1, 1)   # (H, F_in), (H, 1)
    W2, b2 = params["W2"], params["b2"].reshape(-1, 1)   # (H, H),    (H, 1)
    W3, b3 = params["W3"], params["b3"].reshape(-1, 1)   # (O, H),    (O, 1)
    H = W1.shape[0]
    O = W3.shape[0]
    F_in = W1.shape[1]
    assert F_in == L * L * C

    n_tiles = Ep // tile_e
    flops = int(2 * Ep * (F_in * H + H * H + H * O) + Ep * F_in)
    bytes_accessed = int(4 * (src_t.size + dst_t.size + O * Ep
                              + n_tiles * (W1.size + W2.size + W3.size
                                           + b1.size + b2.size + b3.size)))

    const2d = lambda shape: pl.BlockSpec(shape, lambda i: (0, 0))

    out_t = pl.pallas_call(
        partial(lpd_kernel, L=L, C=C),
        out_shape=jax.ShapeDtypeStruct((O, Ep), jnp.float32),
        grid=(n_tiles,),
        in_specs=[
            pl.BlockSpec((L * C, tile_e), lambda i: (0, i)),   # src (feature-major)
            pl.BlockSpec((L * C, tile_e), lambda i: (0, i)),   # dst
            const2d((H, F_in)),                                # W1
            const2d((H, 1)),                                   # b1
            const2d((H, H)),                                   # W2
            const2d((H, 1)),                                   # b2
            const2d((O, H)),                                   # W3
            const2d((O, 1)),                                   # b3
        ],
        out_specs=pl.BlockSpec((O, tile_e), lambda i: (0, i)), # lane-dense output
        compiler_params=pltpu.CompilerParams(
            dimension_semantics=("parallel",),
            vmem_limit_bytes=32 * 1024 * 1024),
        cost_estimate=pl.CostEstimate(flops=flops,
                                      transcendentals=int(Ep * O),
                                      bytes_accessed=bytes_accessed),
    )(src_t, dst_t, W1, b1, W2, b2, W3, b3)

    # (O, Ep) -> drop padding -> (E, O)
    return jnp.transpose(out_t[:, :E])


def lpd_reference(h, edge, params):
    """Pure-JAX reference matching the PyTorch forward (eval mode)."""
    L = h.shape[0]
    src_x = [h[i][edge[0]] for i in range(L)]
    dst_x = [h[i][edge[1]] for i in range(L)]
    blocks = [src_x[i] * dst_x[j] for i in range(L) for j in range(L)]
    x = jnp.concatenate(blocks, axis=1)
    x = jnp.maximum(x @ params["W1"].T + params["b1"], 0.0)
    x = jnp.maximum(x @ params["W2"].T + params["b2"], 0.0)
    x = x @ params["W3"].T + params["b3"]
    return jax.nn.sigmoid(x)


if __name__ == "__main__":
    # Small shapes consistent with the module.
    L = 2          # encoder_layer  -> n_layer = L*L = 4
    N = 64         # number of nodes
    C = 4          # in_channels
    H = 32         # hidden_channels
    O = 1          # out_channels
    E = 2000       # number of edges (deliberately NOT a multiple of tile_e)
    # num_layers = 3 -> Linear(C*L*L, H), Linear(H, H), Linear(H, O)

    key = jax.random.PRNGKey(0)
    k_h, k_e0, k_e1, k1, k2, k3, k4, k5, k6 = jax.random.split(key, 9)

    h = jax.random.normal(k_h, (L, N, C), dtype=jnp.float32)
    edge = jnp.stack([
        jax.random.randint(k_e0, (E,), 0, N),
        jax.random.randint(k_e1, (E,), 0, N),
    ]).astype(jnp.int32)

    F_in = C * L * L
    params = {   # PyTorch nn.Linear layout: W [out, in], b [out]
        "W1": 0.1 * jax.random.normal(k1, (H, F_in), dtype=jnp.float32),
        "b1": 0.1 * jax.random.normal(k2, (H,), dtype=jnp.float32),
        "W2": 0.1 * jax.random.normal(k3, (H, H), dtype=jnp.float32),
        "b2": 0.1 * jax.random.normal(k4, (H,), dtype=jnp.float32),
        "W3": 0.1 * jax.random.normal(k5, (O, H), dtype=jnp.float32),
        "b3": 0.1 * jax.random.normal(k6, (O,), dtype=jnp.float32),
    }

    out = lpd_forward(h, edge, params, tile_e=512)
    out = jax.block_until_ready(out)

    ref = lpd_reference(h, edge, params)
    assert out.shape == (E, O), out.shape
    assert jnp.allclose(out, ref, atol=1e-5, rtol=1e-5), "mismatch vs reference"

    print("KERNEL_OK")
</pallas_src>

<mosaic_0001>
module attributes {stable_mosaic.version = 11 : i64} {
  func.func @lpd_kernel(%arg0: i32, %arg1: memref<8x512xf32, #tpu.memory_space<vmem>>, %arg2: memref<8x512xf32, #tpu.memory_space<vmem>>, %arg3: memref<32x16xf32, #tpu.memory_space<vmem>>, %arg4: memref<32x1xf32, #tpu.memory_space<vmem>>, %arg5: memref<32x32xf32, #tpu.memory_space<vmem>>, %arg6: memref<32x1xf32, #tpu.memory_space<vmem>>, %arg7: memref<1x32xf32, #tpu.memory_space<vmem>>, %arg8: memref<1x1xf32, #tpu.memory_space<vmem>>, %arg9: memref<1x512xf32, #tpu.memory_space<vmem>>) attributes {dimension_semantics = [#tpu.dimension_semantics<parallel>], iteration_bounds = array<i64: 4>, scalar_prefetch = 0 : i64, scratch_operands = 0 : i64, tpu.core_type = #tpu.core_type<tc>, window_params = [{transform_indices = @transform_0, window_bounds = array<i64: 8, 512>}, {transform_indices = @transform_1, window_bounds = array<i64: 8, 512>}, {pipeline_mode = #tpu.pipeline_mode<synchronous>, transform_indices = @transform_2, window_bounds = array<i64: 32, 16>}, {pipeline_mode = #tpu.pipeline_mode<synchronous>, transform_indices = @transform_3, window_bounds = array<i64: 32, 1>}, {pipeline_mode = #tpu.pipeline_mode<synchronous>, transform_indices = @transform_4, window_bounds = array<i64: 32, 32>}, {pipeline_mode = #tpu.pipeline_mode<synchronous>, transform_indices = @transform_5, window_bounds = array<i64: 32, 1>}, {pipeline_mode = #tpu.pipeline_mode<synchronous>, transform_indices = @transform_6, window_bounds = array<i64: 1, 32>}, {pipeline_mode = #tpu.pipeline_mode<synchronous>, transform_indices = @transform_7, window_bounds = array<i64: 1, 1>}, {transform_indices = @transform_8, window_bounds = array<i64: 1, 512>}]} {
    %c0 = arith.constant 0 : index
    %c0_0 = arith.constant 0 : index
    %0 = vector.load %arg1[%c0, %c0_0] : memref<8x512xf32, #tpu.memory_space<vmem>>, vector<8x512xf32>
    %c0_1 = arith.constant 0 : index
    %c0_2 = arith.constant 0 : index
    %1 = vector.load %arg2[%c0_1, %c0_2] : memref<8x512xf32, #tpu.memory_space<vmem>>, vector<8x512xf32>
    %c0_3 = arith.constant 0 : index
    %c0_4 = arith.constant 0 : index
    %2 = vector.load %arg3[%c0_3, %c0_4] : memref<32x16xf32, #tpu.memory_space<vmem>>, vector<32x16xf32>
    %3 = vector.extract_strided_slice %0 {offsets = [0, 0], sizes = [4, 512], strides = [1, 1]} : vector<8x512xf32> to vector<4x512xf32>
    %4 = vector.extract_strided_slice %1 {offsets = [0, 0], sizes = [4, 512], strides = [1, 1]} : vector<8x512xf32> to vector<4x512xf32>
    %5 = arith.mulf %3, %4 : vector<4x512xf32>
    %6 = vector.extract_strided_slice %2 {offsets = [0, 0], sizes = [32, 4], strides = [1, 1]} : vector<32x16xf32> to vector<32x4xf32>
    %cst = arith.constant dense<0.000000e+00> : vector<32x512xf32>
    %7 = tpu.matmul %6, %5, %cst {dimension_numbers = #tpu.dot_dimension_numbers<[1], [0], [0], [1], [0, 0, 1, 1], [], []>} : vector<32x4xf32>, vector<4x512xf32>, vector<32x512xf32> -> vector<32x512xf32>
    %8 = vector.extract_strided_slice %1 {offsets = [4, 0], sizes = [4, 512], strides = [1, 1]} : vector<8x512xf32> to vector<4x512xf32>
    %9 = arith.mulf %3, %8 : vector<4x512xf32>
    %10 = vector.extract_strided_slice %2 {offsets = [0, 4], sizes = [32, 4], strides = [1, 1]} : vector<32x16xf32> to vector<32x4xf32>
    %cst_5 = arith.constant dense<0.000000e+00> : vector<32x512xf32>
    %11 = tpu.matmul %10, %9, %cst_5 {dimension_numbers = #tpu.dot_dimension_numbers<[1], [0], [0], [1], [0, 0, 1, 1], [], []>} : vector<32x4xf32>, vector<4x512xf32>, vector<32x512xf32> -> vector<32x512xf32>
    %12 = arith.addf %7, %11 : vector<32x512xf32>
    %13 = vector.extract_strided_slice %0 {offsets = [4, 0], sizes = [4, 512], strides = [1, 1]} : vector<8x512xf32> to vector<4x512xf32>
    %14 = vector.extract_strided_slice %1 {offsets = [0, 0], sizes = [4, 512], strides = [1, 1]} : vector<8x512xf32> to vector<4x512xf32>
    %15 = arith.mulf %13, %14 : vector<4x512xf32>
    %16 = vector.extract_strided_slice %2 {offsets = [0, 8], sizes = [32, 4], strides = [1, 1]} : vector<32x16xf32> to vector<32x4xf32>
    %cst_6 = arith.constant dense<0.000000e+00> : vector<32x512xf32>
    %17 = tpu.matmul %16, %15, %cst_6 {dimension_numbers = #tpu.dot_dimension_numbers<[1], [0], [0], [1], [0, 0, 1, 1], [], []>} : vector<32x4xf32>, vector<4x512xf32>, vector<32x512xf32> -> vector<32x512xf32>
    %18 = arith.addf %12, %17 : vector<32x512xf32>
    %19 = vector.extract_strided_slice %1 {offsets = [4, 0], sizes = [4, 512], strides = [1, 1]} : vector<8x512xf32> to vector<4x512xf32>
    %20 = arith.mulf %13, %19 : vector<4x512xf32>
    %21 = vector.extract_strided_slice %2 {offsets = [0, 12], sizes = [32, 4], strides = [1, 1]} : vector<32x16xf32> to vector<32x4xf32>
    %cst_7 = arith.constant dense<0.000000e+00> : vector<32x512xf32>
    %22 = tpu.matmul %21, %20, %cst_7 {dimension_numbers = #tpu.dot_dimension_numbers<[1], [0], [0], [1], [0, 0, 1, 1], [], []>} : vector<32x4xf32>, vector<4x512xf32>, vector<32x512xf32> -> vector<32x512xf32>
    %23 = arith.addf %18, %22 : vector<32x512xf32>
    %c0_8 = arith.constant 0 : index
    %c0_9 = arith.constant 0 : index
    %24 = vector.load %arg4[%c0_8, %c0_9] : memref<32x1xf32, #tpu.memory_space<vmem>>, vector<32x1xf32>
    %25 = vector.broadcast %24 : vector<32x1xf32> to vector<32x512xf32>
    %26 = arith.addf %23, %25 : vector<32x512xf32>
    %cst_10 = arith.constant 0.000000e+00 : f32
    %27 = vector.broadcast %cst_10 : f32 to vector<32x512xf32>
    %28 = arith.maximumf %26, %27 : vector<32x512xf32>
    %c0_11 = arith.constant 0 : index
    %c0_12 = arith.constant 0 : index
    %29 = vector.load %arg5[%c0_11, %c0_12] : memref<32x32xf32, #tpu.memory_space<vmem>>, vector<32x32xf32>
    %cst_13 = arith.constant dense<0.000000e+00> : vector<32x512xf32>
    %30 = tpu.matmul %29, %28, %cst_13 {dimension_numbers = #tpu.dot_dimension_numbers<[1], [0], [0], [1], [0, 0, 1, 1], [], []>} : vector<32x32xf32>, vector<32x512xf32>, vector<32x512xf32> -> vector<32x512xf32>
    %c0_14 = arith.constant 0 : index
    %c0_15 = arith.constant 0 : index
    %31 = vector.load %arg6[%c0_14, %c0_15] : memref<32x1xf32, #tpu.memory_space<vmem>>, vector<32x1xf32>
    %32 = vector.broadcast %31 : vector<32x1xf32> to vector<32x512xf32>
    %33 = arith.addf %30, %32 : vector<32x512xf32>
    %cst_16 = arith.constant 0.000000e+00 : f32
    %34 = vector.broadcast %cst_16 : f32 to vector<32x512xf32>
    %35 = arith.maximumf %33, %34 : vector<32x512xf32>
    %c0_17 = arith.constant 0 : index
    %c0_18 = arith.constant 0 : index
    %36 = vector.load %arg7[%c0_17, %c0_18] : memref<1x32xf32, #tpu.memory_space<vmem>>, vector<1x32xf32>
    %cst_19 = arith.constant dense<0.000000e+00> : vector<1x512xf32>
    %37 = tpu.matmul %36, %35, %cst_19 {dimension_numbers = #tpu.dot_dimension_numbers<[1], [0], [0], [1], [0, 0, 1, 1], [], []>} : vector<1x32xf32>, vector<32x512xf32>, vector<1x512xf32> -> vector<1x512xf32>
    %c0_20 = arith.constant 0 : index
    %c0_21 = arith.constant 0 : index
    %38 = vector.load %arg8[%c0_20, %c0_21] : memref<1x1xf32, #tpu.memory_space<vmem>>, vector<1x1xf32>
    %39 = vector.broadcast %38 : vector<1x1xf32> to vector<1x512xf32>
    %40 = arith.addf %37, %39 : vector<1x512xf32>
    %41 = arith.negf %40 : vector<1x512xf32>
    %42 = math.exp %41 : vector<1x512xf32>
    %cst_22 = arith.constant 1.000000e+00 : f32
    %43 = vector.broadcast %cst_22 : f32 to vector<1x512xf32>
    %44 = arith.addf %43, %42 : vector<1x512xf32>
    %45 = arith.divf %43, %44 : vector<1x512xf32>
    %c0_23 = arith.constant 0 : index
    %c0_24 = arith.constant 0 : index
    %46 = vector.load %arg9[%c0_23, %c0_24] : memref<1x512xf32, #tpu.memory_space<vmem>>, vector<1x512xf32>
    tpu.vector_store %arg9[%c0_23, %c0_24], %45 {strides = array<i32>} : memref<1x512xf32, #tpu.memory_space<vmem>>, vector<1x512xf32>,
    return
  }
  func.func @transform_0(%arg0: i32) -> (i32, i32) {
    %c0_i32 = arith.constant 0 : i32
    %c0_i32_0 = arith.constant 0 : i32
    return %c0_i32, %arg0 : i32, i32
  }
  func.func @transform_1(%arg0: i32) -> (i32, i32) {
    %c0_i32 = arith.constant 0 : i32
    %c0_i32_0 = arith.constant 0 : i32
    return %c0_i32, %arg0 : i32, i32
  }
  func.func @transform_2(%arg0: i32) -> (i32, i32) {
    %c0_i32 = arith.constant 0 : i32
    %c0_i32_0 = arith.constant 0 : i32
    %c0_i32_1 = arith.constant 0 : i32
    return %c0_i32, %c0_i32_0 : i32, i32
  }
  func.func @transform_3(%arg0: i32) -> (i32, i32) {
    %c0_i32 = arith.constant 0 : i32
    %c0_i32_0 = arith.constant 0 : i32
    %c0_i32_1 = arith.constant 0 : i32
    return %c0_i32, %c0_i32_0 : i32, i32
  }
  func.func @transform_4(%arg0: i32) -> (i32, i32) {
    %c0_i32 = arith.constant 0 : i32
    %c0_i32_0 = arith.constant 0 : i32
    %c0_i32_1 = arith.constant 0 : i32
    return %c0_i32, %c0_i32_0 : i32, i32
  }
  func.func @transform_5(%arg0: i32) -> (i32, i32) {
    %c0_i32 = arith.constant 0 : i32
    %c0_i32_0 = arith.constant 0 : i32
    %c0_i32_1 = arith.constant 0 : i32
    return %c0_i32, %c0_i32_0 : i32, i32
  }
  func.func @transform_6(%arg0: i32) -> (i32, i32) {
    %c0_i32 = arith.constant 0 : i32
    %c0_i32_0 = arith.constant 0 : i32
    %c0_i32_1 = arith.constant 0 : i32
    return %c0_i32, %c0_i32_0 : i32, i32
  }
  func.func @transform_7(%arg0: i32) -> (i32, i32) {
    %c0_i32 = arith.constant 0 : i32
    %c0_i32_0 = arith.constant 0 : i32
    %c0_i32_1 = arith.constant 0 : i32
    return %c0_i32, %c0_i32_0 : i32, i32
  }
  func.func @transform_8(%arg0: i32) -> (i32, i32) {
    %c0_i32 = arith.constant 0 : i32
    %c0_i32_0 = arith.constant 0 : i32
    return %c0_i32, %arg0 : i32, i32
  }
}

</mosaic_0001>

<llo_original>
// kernel: tpu_custom_call.1
$region0: #{tpu_custom_call.1}
  #allocation0 [shape = 'u32[]', space=smem, size = 0x4, offset = 0x4, fixed_abs, tag = 'smem constant byte address 0x4 - core index']
  #allocation1 [shape = 'u32[144,128]{1,0:T(1,128)}', space=vmem, size = 0x12000, scoped, tag = 'internal scratch']
  #allocation2 [shape = 'f32[1,1]{1,0:T(1,128)S(1)}', space=vmem, size = 0x200, scoped, tag = 'scoped memory for tpu_custom_call.1']
  %s0 = inlined_call_operand.hbm [shape: f32[8,2048], index: 0, kind: input, shape index: {}]
  %s1 = inlined_call_operand.hbm [shape: f32[8,2048], index: 1, kind: input, shape index: {}]
  %s2 = inlined_call_operand.vmem [shape: f32[32,16], index: 2, kind: input, shape index: {}]
  %s3 = inlined_call_operand.vmem [shape: f32[32,1], index: 3, kind: input, shape index: {}]
  %s4 = inlined_call_operand.vmem [shape: f32[32,32], index: 4, kind: input, shape index: {}]
  %s5 = inlined_call_operand.vmem [shape: f32[32,1], index: 5, kind: input, shape index: {}]
  %s6 = inlined_call_operand.vmem [shape: f32[1,32], index: 6, kind: input, shape index: {}]
  %s7 = inlined_call_operand.<no memory space> [shape: f32[1,1], index: 7, kind: input, shape index: {}]
  %s8 = inlined_call_operand.hbm [shape: f32[1,2048], index: 8, kind: output, shape index: {}]
  %s9 = sld [smem:[#allocation0]]
  $region73: #{tpu_custom_call.1} parent=0
    _
  %s11 = ssub.s32 1, %s9
  %s12 = scalar_select 0, %s11, %s9
  %v13 = vstv %s7
  %14 = vst [vmem:[#allocation2] sm:$0x1] %v13
  $region1: #{tpu_custom_call.1} parent=0
    #allocation3 [shape = 'u8[32768]{0}', space=vmem, size = 0x8000, scoped, tag = 'input window, operand 0']
    #allocation4 [shape = 's32[2]{0}', space=sflag, size = 0x8, scoped, tag = 'scoped memory for tpu_custom_call.1']
    #allocation5 [shape = 's32[2]{0}', space=sflag, size = 0x8, scoped, tag = 'scoped memory for tpu_custom_call.1']
    #allocation6 [shape = 'u8[32768]{0}', space=vmem, size = 0x8000, scoped, tag = 'input window, operand 1']
    #allocation7 [shape = 's32[2]{0}', space=sflag, size = 0x8, scoped, tag = 'scoped memory for tpu_custom_call.1']
    #allocation8 [shape = 'u8[4096]{0}', space=vmem, size = 0x1000, scoped, tag = 'output window, operand 0']
    %15 = vsyncpa [#allocation4], 0
    %s16 = scalar_lea.sflag [#allocation4], 1
    %17 = vsyncpa %s16, 0
    %18 = vsyncpa [#allocation7], 0
    %s19 = scalar_lea.sflag [#allocation7], 1
    %20 = vsyncpa %s19, 0
    %21 = vsyncpa [#allocation5], 0
    %s22 = scalar_lea.sflag [#allocation5], 1
    %23 = vsyncpa %s22, 0
    loop: start=0, step=1, limit=6
    $region2: #{tpu_custom_call.1} parent=1 // loop_pre_header
      _
    $region3: #{tpu_custom_call.1} parent=1 // loop_header
      %s25 = sphi 0, %s29
      %p26 = scmp.ge.s32.totalorder %s25, 6
      %s35 = sphi 0, %s37
      %s38 = sphi 0, %s35
      %s39 = sphi 0, %s38
      %s55 = sphi 0, %s39
      %s61 = sphi 0, %s63
      %s64 = sphi 0, %s61
      %s65 = sphi 0, %s64
      %s81 = sphi 0, %s65
      %s85 = sphi 0, %s85
      %s87 = sphi 0, %s85
      %s88 = sphi 0, %s87
      %s102 = sphi 0, %s88
      %s106 = sphi 0, %s106
      %s108 = sphi 0, %s106
      %s109 = sphi 0, %s108
      %s123 = sphi 0, %s109
      %s127 = sphi 0, %s127
      %s129 = sphi 0, %s127
      %s130 = sphi 0, %s129
      %s144 = sphi 0, %s130
      %s148 = sphi 0, %s148
      %s150 = sphi 0, %s148
      %s151 = sphi 0, %s150
      %s165 = sphi 0, %s151
      %s169 = sphi 0, %s169
      %s171 = sphi 0, %s169
      %s172 = sphi 0, %s171
      %s186 = sphi 0, %s172
      %s190 = sphi 0, %s190
      %s192 = sphi 0, %s190
      %s193 = sphi 0, %s192
      %s207 = sphi 0, %s193
      %s213 = sphi 0, %s215
      %s216 = sphi 0, %s213
      %s217 = sphi 0, %s216
      %s233 = sphi 0, %s217
    $region4: #{tpu_custom_call.1} parent=1 // loop_header_branch
      %28 = sbr.rel (%p26) target = $region8
    $region5: #{tpu_custom_call.1} parent=1 // loop_body
      %s30 = ssub.s32 %s25, 1
      %s31 = ssub.s32 %s25, 2
      %s32 = sadd.s32 %s25, 1
      %s33 = ssub.s32 %s25, %s32
      %p34 = scmp.eq.s32.totalorder %s33, 0
      %s36 = sadd.s32 %s35, 1
      %s37 = scalar_select %p34, %s35, %s36
      %p40 = pneg %p34
      %p41 = scmp.eq.s32.totalorder %s25, 3
      %p42 = por %p40, %p41
      %p43 = scmp.ne.s32.totalorder %s35, %s38
      %p44 = scmp.eq.s32.totalorder %s25, 0
      %p45 = por %p43, %p44
      %p46 = scmp.ne.s32.totalorder %s35, %s38
      %p47 = scmp.eq.s32.totalorder %s30, 3
      %p48 = por %p46, %p47
      %p49 = scmp.ne.s32.totalorder %s38, %s39
      %p50 = scmp.eq.s32.totalorder %s30, 0
      %p51 = por %p49, %p50
      %p52 = scmp.ne.s32.totalorder %s38, %s39
      %p53 = scmp.eq.s32.totalorder %s31, 3
      %p54 = por %p52, %p53
      %p56 = scmp.ne.s32.totalorder %s39, %s55
      %p57 = scmp.eq.s32.totalorder %s31, 0
      %p58 = por %p56, %p57
      %s59 = ssub.s32 %s25, %s32
      %p60 = scmp.eq.s32.totalorder %s59, 0
      %s62 = sadd.s32 %s61, 1
      %s63 = scalar_select %p60, %s61, %s62
      %p66 = pneg %p60
      %p67 = scmp.eq.s32.totalorder %s25, 3
      %p68 = por %p66, %p67
      %p69 = scmp.ne.s32.totalorder %s61, %s64
      %p70 = scmp.eq.s32.totalorder %s25, 0
      %p71 = por %p69, %p70
      %p72 = scmp.ne.s32.totalorder %s61, %s64
      %p73 = scmp.eq.s32.totalorder %s30, 3
      %p74 = por %p72, %p73
      %p75 = scmp.ne.s32.totalorder %s64, %s65
      %p76 = scmp.eq.s32.totalorder %s30, 0
      %p77 = por %p75, %p76
      %p78 = scmp.ne.s32.totalorder %s64, %s65
      %p79 = scmp.eq.s32.totalorder %s31, 3
      %p80 = por %p78, %p79
      %p82 = scmp.ne.s32.totalorder %s65, %s81
      %p83 = scmp.eq.s32.totalorder %s31, 0
      %p84 = por %p82, %p83
      %s86 = sadd.s32 %s85, 1
      %p89 = scmp.eq.s32.totalorder %s25, 3
      %p90 = scmp.ne.s32.totalorder %s85, %s87
      %p91 = scmp.eq.s32.totalorder %s25, 0
      %p92 = por %p90, %p91
      %p93 = scmp.ne.s32.totalorder %s85, %s87
      %p94 = scmp.eq.s32.totalorder %s30, 3
      %p95 = por %p93, %p94
      %p96 = scmp.ne.s32.totalorder %s87, %s88
      %p97 = scmp.eq.s32.totalorder %s30, 0
      %p98 = por %p96, %p97
      %p99 = scmp.ne.s32.totalorder %s87, %s88
      %p100 = scmp.eq.s32.totalorder %s31, 3
      %p101 = por %p99, %p100
      %p103 = scmp.ne.s32.totalorder %s88, %s102
      %p104 = scmp.eq.s32.totalorder %s31, 0
      %p105 = por %p103, %p104
      %s107 = sadd.s32 %s106, 1
      %p110 = scmp.eq.s32.totalorder %s25, 3
      %p111 = scmp.ne.s32.totalorder %s106, %s108
      %p112 = scmp.eq.s32.totalorder %s25, 0
      %p113 = por %p111, %p112
      %p114 = scmp.ne.s32.totalorder %s106, %s108
      %p115 = scmp.eq.s32.totalorder %s30, 3
      %p116 = por %p114, %p115
      %p117 = scmp.ne.s32.totalorder %s108, %s109
      %p118 = scmp.eq.s32.totalorder %s30, 0
      %p119 = por %p117, %p118
      %p120 = scmp.ne.s32.totalorder %s108, %s109
      %p121 = scmp.eq.s32.totalorder %s31, 3
      %p122 = por %p120, %p121
      %p124 = scmp.ne.s32.totalorder %s109, %s123
      %p125 = scmp.eq.s32.totalorder %s31, 0
      %p126 = por %p124, %p125
      %s128 = sadd.s32 %s127, 1
      %p131 = scmp.eq.s32.totalorder %s25, 3
      %p132 = scmp.ne.s32.totalorder %s127, %s129
      %p133 = scmp.eq.s32.totalorder %s25, 0
      %p134 = por %p132, %p133
      %p135 = scmp.ne.s32.totalorder %s127, %s129
      %p136 = scmp.eq.s32.totalorder %s30, 3
      %p137 = por %p135, %p136
      %p138 = scmp.ne.s32.totalorder %s129, %s130
      %p139 = scmp.eq.s32.totalorder %s30, 0
      %p140 = por %p138, %p139
      %p141 = scmp.ne.s32.totalorder %s129, %s130
      %p142 = scmp.eq.s32.totalorder %s31, 3
      %p143 = por %p141, %p142
      %p145 = scmp.ne.s32.totalorder %s130, %s144
      %p146 = scmp.eq.s32.totalorder %s31, 0
      %p147 = por %p145, %p146
      %s149 = sadd.s32 %s148, 1
      %p152 = scmp.eq.s32.totalorder %s25, 3
      %p153 = scmp.ne.s32.totalorder %s148, %s150
      %p154 = scmp.eq.s32.totalorder %s25, 0
      %p155 = por %p153, %p154
      %p156 = scmp.ne.s32.totalorder %s148, %s150
      %p157 = scmp.eq.s32.totalorder %s30, 3
      %p158 = por %p156, %p157
      %p159 = scmp.ne.s32.totalorder %s150, %s151
      %p160 = scmp.eq.s32.totalorder %s30, 0
      %p161 = por %p159, %p160
      %p162 = scmp.ne.s32.totalorder %s150, %s151
      %p163 = scmp.eq.s32.totalorder %s31, 3
      %p164 = por %p162, %p163
      %p166 = scmp.ne.s32.totalorder %s151, %s165
      %p167 = scmp.eq.s32.totalorder %s31, 0
      %p168 = por %p166, %p167
      %s170 = sadd.s32 %s169, 1
      %p173 = scmp.eq.s32.totalorder %s25, 3
      %p174 = scmp.ne.s32.totalorder %s169, %s171
      %p175 = scmp.eq.s32.totalorder %s25, 0
      %p176 = por %p174, %p175
      %p177 = scmp.ne.s32.totalorder %s169, %s171
      %p178 = scmp.eq.s32.totalorder %s30, 3
      %p179 = por %p177, %p178
      %p180 = scmp.ne.s32.totalorder %s171, %s172
      %p181 = scmp.eq.s32.totalorder %s30, 0
      %p182 = por %p180, %p181
      %p183 = scmp.ne.s32.totalorder %s171, %s172
      %p184 = scmp.eq.s32.totalorder %s31, 3
      %p185 = por %p183, %p184
      %p187 = scmp.ne.s32.totalorder %s172, %s186
      %p188 = scmp.eq.s32.totalorder %s31, 0
      %p189 = por %p187, %p188
      %s191 = sadd.s32 %s190, 1
      %p194 = scmp.eq.s32.totalorder %s25, 3
      %p195 = scmp.ne.s32.totalorder %s190, %s192
      %p196 = scmp.eq.s32.totalorder %s25, 0
      %p197 = por %p195, %p196
      %p198 = scmp.ne.s32.totalorder %s190, %s192
      %p199 = scmp.eq.s32.totalorder %s30, 3
      %p200 = por %p198, %p199
      %p201 = scmp.ne.s32.totalorder %s192, %s193
      %p202 = scmp.eq.s32.totalorder %s30, 0
      %p203 = por %p201, %p202
      %p204 = scmp.ne.s32.totalorder %s192, %s193
      %p205 = scmp.eq.s32.totalorder %s31, 3
      %p206 = por %p204, %p205
      %p208 = scmp.ne.s32.totalorder %s193, %s207
      %p209 = scmp.eq.s32.totalorder %s31, 0
      %p210 = por %p208, %p209
      %s211 = ssub.s32 %s25, %s32
      %p212 = scmp.eq.s32.totalorder %s211, 0
      %s214 = sadd.s32 %s213, 1
      %s215 = scalar_select %p212, %s213, %s214
      %p218 = pneg %p212
      %p219 = scmp.eq.s32.totalorder %s25, 3
      %p220 = por %p218, %p219
      %p221 = scmp.ne.s32.totalorder %s213, %s216
      %p222 = scmp.eq.s32.totalorder %s25, 0
      %p223 = por %p221, %p222
      %p224 = scmp.ne.s32.totalorder %s213, %s216
      %p225 = scmp.eq.s32.totalorder %s30, 3
      %p226 = por %p224, %p225
      %p227 = scmp.ne.s32.totalorder %s216, %s217
      %p228 = scmp.eq.s32.totalorder %s30, 0
      %p229 = por %p227, %p228
      %p230 = scmp.ne.s32.totalorder %s216, %s217
      %p231 = scmp.eq.s32.totalorder %s31, 3
      %p232 = por %p230, %p231
      %p234 = scmp.ne.s32.totalorder %s217, %s233
      %p235 = scmp.eq.s32.totalorder %s31, 0
      %p236 = por %p234, %p235
      %p237 = scmp.le.s32.totalorder 1, %s25
      %p238 = scmp.lt.s32.totalorder %s25, 5
      %p239 = pnand %p237, %p238
      %p240 = pneg %p239
      // Predicated region
      $region9: #{tpu_custom_call.1} parent=5 // pred_check
        _
      $region10: #{tpu_custom_call.1} parent=5 // pred_check_branch
        %242 = sbr.rel (%p239) target = $region12
      $region11: #{tpu_custom_call.1} parent=5 // pred_region
        %s243 = ssub.s32 %s25, 1
        // Predicated region
        $region13: #{tpu_custom_call.1} parent=11 // pred_check
          %p244 = pneg %p98
        $region14: #{tpu_custom_call.1} parent=11 // pred_check_branch
          %246 = sbr.rel (%p244) target = $region16
        $region15: #{tpu_custom_call.1} parent=11 // pred_region
          _
        $region16: #{tpu_custom_call.1} parent=11 // pred_fallthru
          _
        // Predicated region
        $region17: #{tpu_custom_call.1} parent=11 // pred_check
          %p247 = pneg %p119
        $region18: #{tpu_custom_call.1} parent=11 // pred_check_branch
          %249 = sbr.rel (%p247) target = $region20
        $region19: #{tpu_custom_call.1} parent=11 // pred_region
          _
        $region20: #{tpu_custom_call.1} parent=11 // pred_fallthru
          _
        // Predicated region
        $region21: #{tpu_custom_call.1} parent=11 // pred_check
          %p250 = pneg %p140
        $region22: #{tpu_custom_call.1} parent=11 // pred_check_branch
          %252 = sbr.rel (%p250) target = $region24
        $region23: #{tpu_custom_call.1} parent=11 // pred_region
          _
        $region24: #{tpu_custom_call.1} parent=11 // pred_fallthru
          _
        // Predicated region
        $region25: #{tpu_custom_call.1} parent=11 // pred_check
          %p253 = pneg %p161
        $region26: #{tpu_custom_call.1} parent=11 // pred_check_branch
          %255 = sbr.rel (%p253) target = $region28
        $region27: #{tpu_custom_call.1} parent=11 // pred_region
          _
        $region28: #{tpu_custom_call.1} parent=11 // pred_fallthru
          _
        // Predicated region
        $region29: #{tpu_custom_call.1} parent=11 // pred_check
          %p256 = pneg %p182
        $region30: #{tpu_custom_call.1} parent=11 // pred_check_branch
          %258 = sbr.rel (%p256) target = $region32
        $region31: #{tpu_custom_call.1} parent=11 // pred_region
          _
        $region32: #{tpu_custom_call.1} parent=11 // pred_fallthru
          _
        // Predicated region
        $region33: #{tpu_custom_call.1} parent=11 // pred_check
          %p259 = pneg %p203
        $region34: #{tpu_custom_call.1} parent=11 // pred_check_branch
          %261 = sbr.rel (%p259) target = $region36
        $region35: #{tpu_custom_call.1} parent=11 // pred_region
          _
        $region36: #{tpu_custom_call.1} parent=11 // pred_fallthru
          _
      $region12: #{tpu_custom_call.1} parent=5 // pred_fallthru
        _
      %p262 = scmp.lt.s32.totalorder %s25, 4
      // Predicated region
      $region37: #{tpu_custom_call.1} parent=5 // pred_check
        %p263 = pneg %p262
      $region38: #{tpu_custom_call.1} parent=5 // pred_check_branch
        %265 = sbr.rel (%p263) target = $region40
      $region39: #{tpu_custom_call.1} parent=5 // pred_region
        // Predicated region
        $region41: #{tpu_custom_call.1} parent=39 // pred_check
          %p266 = pneg %p45
        $region42: #{tpu_custom_call.1} parent=39 // pred_check_branch
          %268 = sbr.rel (%p266) target = $region44
        $region43: #{tpu_custom_call.1} parent=39 // pred_region
          %s269 = sand.u32 %s35, 1
          %s270 = scalar_lea.sflag [#allocation4], %s269
          %s271 = sand.u32 %s35, 1
          %s272 = smul.addr %s271, 32
          %s273 = scalar_lea.vmem [#allocation3], %s272
          %s274 = smul.u32 4, %s25
          %s276 = ssub.s32 512, 512
          %277 = vsyncadd %s270, %s276
          %s278 = smul.addr %s274, 128
          %s279 = scalar_lea.hbm %s0, %s278
          %s281 = sshll.u32 %s273, 4
          %s282 = int_to_ptr.vmem [resolvable:$true] %s281
          %284 = dma.hbm_to_vmem [thread:$0]  %s279, 512, %s282, %s270
        $region44: #{tpu_custom_call.1} parent=39 // pred_fallthru
          _
        // Predicated region
        $region45: #{tpu_custom_call.1} parent=39 // pred_check
          %p285 = pneg %p71
        $region46: #{tpu_custom_call.1} parent=39 // pred_check_branch
          %287 = sbr.rel (%p285) target = $region48
        $region47: #{tpu_custom_call.1} parent=39 // pred_region
          %s288 = sand.u32 %s61, 1
          %s289 = scalar_lea.sflag [#allocation7], %s288
          %s290 = sand.u32 %s61, 1
          %s291 = smul.addr %s290, 32
          %s292 = scalar_lea.vmem [#allocation6], %s291
          %s293 = smul.u32 4, %s25
          %s295 = ssub.s32 512, 512
          %296 = vsyncadd %s289, %s295
          %s297 = smul.addr %s293, 128
          %s298 = scalar_lea.hbm %s1, %s297
          %s300 = sshll.u32 %s292, 4
          %s301 = int_to_ptr.vmem [resolvable:$true] %s300
          %303 = dma.hbm_to_vmem [thread:$0]  %s298, 512, %s301, %s289
        $region48: #{tpu_custom_call.1} parent=39 // pred_fallthru
          _
      $region40: #{tpu_custom_call.1} parent=5 // pred_fallthru
        _
      %p304 = scmp.le.s32.totalorder 1, %s25
      %p305 = scmp.lt.s32.totalorder %s25, 5
      %p306 = pnand %p304, %p305
      %p307 = pneg %p306
      // Predicated region
      $region49: #{tpu_custom_call.1} parent=5 // pred_check
        _
      $region50: #{tpu_custom_call.1} parent=5 // pred_check_branch
        %309 = sbr.rel (%p306) target = $region52
      $region51: #{tpu_custom_call.1} parent=5 // pred_region
        %s310 = ssub.s32 %s25, 1
        %s311 = sand.u32 %s38, 1
        %s312 = scalar_lea.sflag [#allocation4], %s311
        %s313 = sand.u32 %s38, 1
        %s314 = smul.addr %s313, 32
        %s315 = scalar_lea.vmem [#allocation3], %s314
        // Predicated region
        $region53: #{tpu_custom_call.1} parent=51 // pred_check
          %p316 = pneg %p51
        $region54: #{tpu_custom_call.1} parent=51 // pred_check_branch
          %318 = sbr.rel (%p316) target = $region56
        $region55: #{tpu_custom_call.1} parent=51 // pred_region
          %319 = dma.done %s312, 512
        $region56: #{tpu_custom_call.1} parent=51 // pred_fallthru
          _
        %s320 = sand.u32 %s64, 1
        %s321 = scalar_lea.sflag [#allocation7], %s320
        %s322 = sand.u32 %s64, 1
        %s323 = smul.addr %s322, 32
        %s324 = scalar_lea.vmem [#allocation6], %s323
        // Predicated region
        $region57: #{tpu_custom_call.1} parent=51 // pred_check
          %p325 = pneg %p77
        $region58: #{tpu_custom_call.1} parent=51 // pred_check_branch
          %327 = sbr.rel (%p325) target = $region60
        $region59: #{tpu_custom_call.1} parent=51 // pred_region
          %328 = dma.done %s321, 512
        $region60: #{tpu_custom_call.1} parent=51 // pred_fallthru
          _
        %s329 = sand.u32 %s38, 1
        %s330 = scalar_lea.sflag [#allocation4], %s329
        %s331 = sand.u32 %s38, 1
        %s332 = smul.addr %s331, 32
        %s333 = scalar_lea.vmem [#allocation3], %s332
        %p334 = pneg %p51
        %p335 = pneg %p48
        %s336 = sand.u32 %s64, 1
        %s337 = scalar_lea.sflag [#allocation7], %s336
        %s338 = sand.u32 %s64, 1
        %s339 = smul.addr %s338, 32
        %s340 = scalar_lea.vmem [#allocation6], %s339
        %p341 = pneg %p77
        %p342 = pneg %p74
        %p343 = pneg %p98
        %p344 = pneg %p95
        %p345 = pneg %p119
        %p346 = pneg %p116
        %p347 = pneg %p140
        %p348 = pneg %p137
        %p349 = pneg %p161
        %p350 = pneg %p158
        %p351 = pneg %p182
        %p352 = pneg %p179
        %p353 = pneg %p203
        %p354 = pneg %p200
        %p355 = pneg %p229
        %p356 = pneg %p226
        %s357 = sand.u32 %s216, 1
        %s358 = scalar_lea.sflag [#allocation5], %s357
        %s359 = sand.u32 %s216, 1
        %s360 = smul.addr %s359, 4
        %s361 = scalar_lea.vmem [#allocation8], %s360
        %s362 = smul.u32 4, %s30
        %s363 = smul.u32 4, %s30
        %s364 = smul.u32 4, %s30
        %v365 = vld [vmem:[%s315] sm:$0xff]
        %v366 = vld [vmem:[%s315 + $0x8] sm:$0xff]
        %v367 = vld [vmem:[%s315 + $0x10] sm:$0xff]
        %v368 = vld [vmem:[%s315 + $0x18] sm:$0xff]
        %v369 = vld [vmem:[%s324] sm:$0xff]
        %v370 = vld [vmem:[%s324 + $0x8] sm:$0xff]
        %v371 = vld [vmem:[%s324 + $0x10] sm:$0xff]
        %v372 = vld [vmem:[%s324 + $0x18] sm:$0xff]
        %v373 = vld [vmem:[%s2] sm:$0xff]
        %v374 = vld [vmem:[%s2 + $0x8] sm:$0xff]
        %v375 = vld [vmem:[%s2 + $0x10] sm:$0xff]
        %v376 = vld [vmem:[%s2 + $0x18] sm:$0xff]
        %v377 = vmul.f32 %v365, %v369
        %v378 = vmul.f32 %v366, %v370
        %v379 = vmul.f32 %v367, %v371
        %v380 = vmul.f32 %v368, %v372
        %v385 = vrot.slane %v369, 4
        %v386 = vrot.slane %v370, 4
        %v387 = vrot.slane %v371, 4
        %v388 = vrot.slane %v372, 4
        %v393 = vmul.f32 %v365, %v385
        %v394 = vmul.f32 %v366, %v386
        %v395 = vmul.f32 %v367, %v387
        %v396 = vmul.f32 %v368, %v388
        %401 = vrot.lane.b32.xlu0 %v373, 124
        %v402 = vpop.permute.xlu0 %401
        %403 = vrot.lane.b32.xlu0 %v374, 124
        %v404 = vpop.permute.xlu0 %403
        %405 = vrot.lane.b32.xlu0 %v375, 124
        %v406 = vpop.permute.xlu0 %405
        %407 = vrot.lane.b32.xlu0 %v376, 124
        %v408 = vpop.permute.xlu0 %407
        %vm409 = vcmask 31744
        %v410 = vsel %vm409, %v402, 0
        %v412 = vsel %vm409, %v404, 0
        %v414 = vsel %vm409, %v406, 0
        %v416 = vsel %vm409, %v408, 0
        %vm418 = vcmask 1043456
        %v420 = vsel %vm418, %v393, 0
        %v423 = vsel %vm418, %v394, 0
        %v426 = vsel %vm418, %v395, 0
        %v429 = vsel %vm418, %v396, 0
        %431 = vmatprep.subr.mxu0 0.0
        %432 = vmatpush1.msra.mxu0 0.0
        %433 = vmatprep.subr.mxu0 0.0
        %434 = vmatpush1.msra.mxu0 0.0
        %435 = vmatprep.subr.mxu0 0.0
        %436 = vmatpush1.msra.mxu0 0.0
        %437 = vmatprep.subr.mxu0 0.0
        %438 = vmatpush1.msra.mxu0 0.0
        %439 = vmatprep.subr.mxu0 0.0
        %440 = vmatpush1.msra.mxu0 0.0
        %441 = vmatprep.subr.mxu0 0.0
        %442 = vmatpush1.msra.mxu0 0.0
        %443 = vmatprep.subr.mxu0 0.0
        %444 = vmatpush1.msra.mxu0 0.0
        %445 = vmatprep.subr.mxu0 0.0
        %446 = vmatpush1.msra.mxu0 0.0
        %447 = vmatprep.subr.mxu0 0.0
        %448 = vmatpush1.msra.mxu0 0.0
        %449 = vmatprep.subr.mxu0 0.0
        %450 = vmatpush1.msra.mxu0 0.0
        %451 = vmatprep.subr.mxu0 0.0
        %452 = vmatpush1.msra.mxu0 0.0
        %453 = vmatprep.subr.mxu0 0.0
        %454 = vmatpush1.msra.mxu0 0.0
        %455 = vmatprep.subr.mxu0 0.0
        %456 = vmatpush1.msra.mxu0 0.0
        %457 = vmatprep.subr.mxu0 0.0
        %458 = vmatpush1.msra.mxu0 0.0
        %459 = vmatprep.subr.mxu0 0.0
        %460 = vmatpush1.msra.mxu0 0.0
        %461 = vmatprep.subr.mxu0 %v423
        %462 = vmatpush1.msra.mxu0 %v420
        %463 = vmatprep.subr.mxu0 0.0
        %464 = vmatpush2.msra.mxu0 0.0
        %465 = vmatprep.subr.mxu0 0.0
        %466 = vmatpush2.msra.mxu0 0.0
        %467 = vmatprep.subr.mxu0 0.0
        %468 = vmatpush2.msra.mxu0 0.0
        %469 = vmatprep.subr.mxu0 0.0
        %470 = vmatpush2.msra.mxu0 0.0
        %471 = vmatprep.subr.mxu0 0.0
        %472 = vmatpush2.msra.mxu0 0.0
        %473 = vmatprep.subr.mxu0 0.0
        %474 = vmatpush2.msra.mxu0 0.0
        %475 = vmatprep.subr.mxu0 0.0
        %476 = vmatpush2.msra.mxu0 0.0
        %477 = vmatprep.subr.mxu0 0.0
        %478 = vmatpush2.msra.mxu0 0.0
        %479 = vmatprep.subr.mxu0 0.0
        %480 = vmatpush2.msra.mxu0 0.0
        %481 = vmatprep.subr.mxu0 0.0
        %482 = vmatpush2.msra.mxu0 0.0
        %483 = vmatprep.subr.mxu0 0.0
        %484 = vmatpush2.msra.mxu0 0.0
        %485 = vmatprep.subr.mxu0 0.0
        %486 = vmatpush2.msra.mxu0 0.0
        %487 = vmatprep.subr.mxu0 0.0
        %488 = vmatpush2.msra.mxu0 0.0
        %489 = vmatprep.subr.mxu0 0.0
        %490 = vmatpush2.msra.mxu0 0.0
        %491 = vmatprep.subr.mxu0 0.0
        %492 = vmatpush2.msra.mxu0 0.0
        %493 = vmatprep.subr.mxu0 0.0
        %494 = vmatpush2.msra.mxu0 0.0
        %495 = vmatprep.mubr.f32.mxu0 0.0
        %496 = vmatmul.mubr.f32.gmra.mxu0 %v410
        %v497 = vpop.f32.mrf.mxu0
        %v498 = vadd.f32 0.0, %v497
        %v499 = vpop.f32.mrf.mxu0
        %v500 = vadd.f32 0.0, %v499
        %501 = vmatprep.mubr.f32.mxu0 0.0
        %502 = vmatmul.mubr.f32.gmra.mxu0 %v412
        %v503 = vpop.f32.mrf.mxu0
        %v504 = vadd.f32 0.0, %v503
        %v505 = vpop.f32.mrf.mxu0
        %v506 = vadd.f32 0.0, %v505
        %507 = vmatprep.mubr.f32.mxu0 0.0
        %508 = vmatmul.mubr.f32.gmra.mxu0 %v414
        %v509 = vpop.f32.mrf.mxu0
        %v510 = vadd.f32 0.0, %v509
        %v511 = vpop.f32.mrf.mxu0
        %v512 = vadd.f32 0.0, %v511
        %513 = vmatprep.mubr.f32.mxu0 0.0
        %514 = vmatmul.mubr.f32.gmra.mxu0 %v416
        %v515 = vpop.f32.mrf.mxu0
        %v516 = vadd.f32 0.0, %v515
        %v517 = vpop.f32.mrf.mxu0
        %v518 = vadd.f32 0.0, %v517
        %519 = vdwg.mxu0
        %520 = vmatprep.subr.mxu0 0.0
        %521 = vmatpush1.msra.mxu0 0.0
        %522 = vmatprep.subr.mxu0 0.0
        %523 = vmatpush1.msra.mxu0 0.0
        %524 = vmatprep.subr.mxu0 0.0
        %525 = vmatpush1.msra.mxu0 0.0
        %526 = vmatprep.subr.mxu0 0.0
        %527 = vmatpush1.msra.mxu0 0.0
        %528 = vmatprep.subr.mxu0 0.0
        %529 = vmatpush1.msra.mxu0 0.0
        %530 = vmatprep.subr.mxu0 0.0
        %531 = vmatpush1.msra.mxu0 0.0
        %532 = vmatprep.subr.mxu0 0.0
        %533 = vmatpush1.msra.mxu0 0.0
        %534 = vmatprep.subr.mxu0 0.0
        %535 = vmatpush1.msra.mxu0 0.0
        %536 = vmatprep.subr.mxu0 0.0
        %537 = vmatpush1.msra.mxu0 0.0
        %538 = vmatprep.subr.mxu0 0.0
        %539 = vmatpush1.msra.mxu0 0.0
        %540 = vmatprep.subr.mxu0 0.0
        %541 = vmatpush1.msra.mxu0 0.0
        %542 = vmatprep.subr.mxu0 0.0
        %543 = vmatpush1.msra.mxu0 0.0
        %544 = vmatprep.subr.mxu0 0.0
        %545 = vmatpush1.msra.mxu0 0.0
        %546 = vmatprep.subr.mxu0 0.0
        %547 = vmatpush1.msra.mxu0 0.0
        %548 = vmatprep.subr.mxu0 0.0
        %549 = vmatpush1.msra.mxu0 0.0
        %550 = vmatprep.subr.mxu0 %v429
        %551 = vmatpush1.msra.mxu0 %v426
        %552 = vmatprep.subr.mxu0 0.0
        %553 = vmatpush2.msra.mxu0 0.0
        %554 = vmatprep.subr.mxu0 0.0
        %555 = vmatpush2.msra.mxu0 0.0
        %556 = vmatprep.subr.mxu0 0.0
        %557 = vmatpush2.msra.mxu0 0.0
        %558 = vmatprep.subr.mxu0 0.0
        %559 = vmatpush2.msra.mxu0 0.0
        %560 = vmatprep.subr.mxu0 0.0
        %561 = vmatpush2.msra.mxu0 0.0
        %562 = vmatprep.subr.mxu0 0.0
        %563 = vmatpush2.msra.mxu0 0.0
        %564 = vmatprep.subr.mxu0 0.0
        %565 = vmatpush2.msra.mxu0 0.0
        %566 = vmatprep.subr.mxu0 0.0
        %567 = vmatpush2.msra.mxu0 0.0
        %568 = vmatprep.subr.mxu0 0.0
        %569 = vmatpush2.msra.mxu0 0.0
        %570 = vmatprep.subr.mxu0 0.0
        %571 = vmatpush2.msra.mxu0 0.0
        %572 = vmatprep.subr.mxu0 0.0
        %573 = vmatpush2.msra.mxu0 0.0
        %574 = vmatprep.subr.mxu0 0.0
        %575 = vmatpush2.msra.mxu0 0.0
        %576 = vmatprep.subr.mxu0 0.0
        %577 = vmatpush2.msra.mxu0 0.0
        %578 = vmatprep.subr.mxu0 0.0
        %579 = vmatpush2.msra.mxu0 0.0
        %580 = vmatprep.subr.mxu0 0.0
        %581 = vmatpush2.msra.mxu0 0.0
        %582 = vmatprep.subr.mxu0 0.0
        %583 = vmatpush2.msra.mxu0 0.0
        %584 = vmatprep.mubr.f32.mxu0 0.0
        %585 = vmatmul.mubr.f32.gmra.mxu0 %v410
        %v586 = vpop.f32.mrf.mxu0
        %v587 = vadd.f32 0.0, %v586
        %v588 = vpop.f32.mrf.mxu0
        %v589 = vadd.f32 0.0, %v588
        %590 = vmatprep.mubr.f32.mxu0 0.0
        %591 = vmatmul.mubr.f32.gmra.mxu0 %v412
        %v592 = vpop.f32.mrf.mxu0
        %v593 = vadd.f32 0.0, %v592
        %v594 = vpop.f32.mrf.mxu0
        %v595 = vadd.f32 0.0, %v594
        %596 = vmatprep.mubr.f32.mxu0 0.0
        %597 = vmatmul.mubr.f32.gmra.mxu0 %v414
        %v598 = vpop.f32.mrf.mxu0
        %v599 = vadd.f32 0.0, %v598
        %v600 = vpop.f32.mrf.mxu0
        %v601 = vadd.f32 0.0, %v600
        %602 = vmatprep.mubr.f32.mxu0 0.0
        %603 = vmatmul.mubr.f32.gmra.mxu0 %v416
        %v604 = vpop.f32.mrf.mxu0
        %v605 = vadd.f32 0.0, %v604
        %v606 = vpop.f32.mrf.mxu0
        %v607 = vadd.f32 0.0, %v606
        %608 = vdwg.mxu0
        %v609 = vsel %vm409, %v373, 0
        %v611 = vsel %vm409, %v374, 0
        %v613 = vsel %vm409, %v375, 0
        %v615 = vsel %vm409, %v376, 0
        %v618 = vsel %vm418, %v377, 0
        %v621 = vsel %vm418, %v378, 0
        %v624 = vsel %vm418, %v379, 0
        %v627 = vsel %vm418, %v380, 0
        %629 = vmatprep.subr.mxu0 0.0
        %630 = vmatpush1.msra.mxu0 0.0
        %631 = vmatprep.subr.mxu0 0.0
        %632 = vmatpush1.msra.mxu0 0.0
        %633 = vmatprep.subr.mxu0 0.0
        %634 = vmatpush1.msra.mxu0 0.0
        %635 = vmatprep.subr.mxu0 0.0
        %636 = vmatpush1.msra.mxu0 0.0
        %637 = vmatprep.subr.mxu0 0.0
        %638 = vmatpush1.msra.mxu0 0.0
        %639 = vmatprep.subr.mxu0 0.0
        %640 = vmatpush1.msra.mxu0 0.0
        %641 = vmatprep.subr.mxu0 0.0
        %642 = vmatpush1.msra.mxu0 0.0
        %643 = vmatprep.subr.mxu0 0.0
        %644 = vmatpush1.msra.mxu0 0.0
        %645 = vmatprep.subr.mxu0 0.0
        %646 = vmatpush1.msra.mxu0 0.0
        %647 = vmatprep.subr.mxu0 0.0
        %648 = vmatpush1.msra.mxu0 0.0
        %649 = vmatprep.subr.mxu0 0.0
        %650 = vmatpush1.msra.mxu0 0.0
        %651 = vmatprep.subr.mxu0 0.0
        %652 = vmatpush1.msra.mxu0 0.0
        %653 = vmatprep.subr.mxu0 0.0
        %654 = vmatpush1.msra.mxu0 0.0
        %655 = vmatprep.subr.mxu0 0.0
        %656 = vmatpush1.msra.mxu0 0.0
        %657 = vmatprep.subr.mxu0 0.0
        %658 = vmatpush1.msra.mxu0 0.0
        %659 = vmatprep.subr.mxu0 %v621
        %660 = vmatpush1.msra.mxu0 %v618
        %661 = vmatprep.subr.mxu0 0.0
        %662 = vmatpush2.msra.mxu0 0.0
        %663 = vmatprep.subr.mxu0 0.0
        %664 = vmatpush2.msra.mxu0 0.0
        %665 = vmatprep.subr.mxu0 0.0
        %666 = vmatpush2.msra.mxu0 0.0
        %667 = vmatprep.subr.mxu0 0.0
        %668 = vmatpush2.msra.mxu0 0.0
        %669 = vmatprep.subr.mxu0 0.0
        %670 = vmatpush2.msra.mxu0 0.0
        %671 = vmatprep.subr.mxu0 0.0
        %672 = vmatpush2.msra.mxu0 0.0
        %673 = vmatprep.subr.mxu0 0.0
        %674 = vmatpush2.msra.mxu0 0.0
        %675 = vmatprep.subr.mxu0 0.0
        %676 = vmatpush2.msra.mxu0 0.0
        %677 = vmatprep.subr.mxu0 0.0
        %678 = vmatpush2.msra.mxu0 0.0
        %679 = vmatprep.subr.mxu0 0.0
        %680 = vmatpush2.msra.mxu0 0.0
        %681 = vmatprep.subr.mxu0 0.0
        %682 = vmatpush2.msra.mxu0 0.0
        %683 = vmatprep.subr.mxu0 0.0
        %684 = vmatpush2.msra.mxu0 0.0
        %685 = vmatprep.subr.mxu0 0.0
        %686 = vmatpush2.msra.mxu0 0.0
        %687 = vmatprep.subr.mxu0 0.0
        %688 = vmatpush2.msra.mxu0 0.0
        %689 = vmatprep.subr.mxu0 0.0
        %690 = vmatpush2.msra.mxu0 0.0
        %691 = vmatprep.subr.mxu0 0.0
        %692 = vmatpush2.msra.mxu0 0.0
        %693 = vmatprep.mubr.f32.mxu0 0.0
        %694 = vmatmul.mubr.f32.gmra.mxu0 %v609
        %v695 = vpop.f32.mrf.mxu0
        %v696 = vadd.f32 %v498, %v695
        %v697 = vpop.f32.mrf.mxu0
        %v698 = vadd.f32 %v500, %v697
        %699 = vmatprep.mubr.f32.mxu0 0.0
        %700 = vmatmul.mubr.f32.gmra.mxu0 %v611
        %v701 = vpop.f32.mrf.mxu0
        %v702 = vadd.f32 %v504, %v701
        %v703 = vpop.f32.mrf.mxu0
        %v704 = vadd.f32 %v506, %v703
        %705 = vmatprep.mubr.f32.mxu0 0.0
        %706 = vmatmul.mubr.f32.gmra.mxu0 %v613
        %v707 = vpop.f32.mrf.mxu0
        %v708 = vadd.f32 %v510, %v707
        %v709 = vpop.f32.mrf.mxu0
        %v710 = vadd.f32 %v512, %v709
        %711 = vmatprep.mubr.f32.mxu0 0.0
        %712 = vmatmul.mubr.f32.gmra.mxu0 %v615
        %v713 = vpop.f32.mrf.mxu0
        %v714 = vadd.f32 %v516, %v713
        %v715 = vpop.f32.mrf.mxu0
        %v716 = vadd.f32 %v518, %v715
        %717 = vdwg.mxu0
        %718 = vmatprep.subr.mxu0 0.0
        %719 = vmatpush1.msra.mxu0 0.0
        %720 = vmatprep.subr.mxu0 0.0
        %721 = vmatpush1.msra.mxu0 0.0
        %722 = vmatprep.subr.mxu0 0.0
        %723 = vmatpush1.msra.mxu0 0.0
        %724 = vmatprep.subr.mxu0 0.0
        %725 = vmatpush1.msra.mxu0 0.0
        %726 = vmatprep.subr.mxu0 0.0
        %727 = vmatpush1.msra.mxu0 0.0
        %728 = vmatprep.subr.mxu0 0.0
        %729 = vmatpush1.msra.mxu0 0.0
        %730 = vmatprep.subr.mxu0 0.0
        %731 = vmatpush1.msra.mxu0 0.0
        %732 = vmatprep.subr.mxu0 0.0
        %733 = vmatpush1.msra.mxu0 0.0
        %734 = vmatprep.subr.mxu0 0.0
        %735 = vmatpush1.msra.mxu0 0.0
        %736 = vmatprep.subr.mxu0 0.0
        %737 = vmatpush1.msra.mxu0 0.0
        %738 = vmatprep.subr.mxu0 0.0
        %739 = vmatpush1.msra.mxu0 0.0
        %740 = vmatprep.subr.mxu0 0.0
        %741 = vmatpush1.msra.mxu0 0.0
        %742 = vmatprep.subr.mxu0 0.0
        %743 = vmatpush1.msra.mxu0 0.0
        %744 = vmatprep.subr.mxu0 0.0
        %745 = vmatpush1.msra.mxu0 0.0
        %746 = vmatprep.subr.mxu0 0.0
        %747 = vmatpush1.msra.mxu0 0.0
        %748 = vmatprep.subr.mxu0 %v627
        %749 = vmatpush1.msra.mxu0 %v624
        %750 = vmatprep.subr.mxu0 0.0
        %751 = vmatpush2.msra.mxu0 0.0
        %752 = vmatprep.subr.mxu0 0.0
        %753 = vmatpush2.msra.mxu0 0.0
        %754 = vmatprep.subr.mxu0 0.0
        %755 = vmatpush2.msra.mxu0 0.0
        %756 = vmatprep.subr.mxu0 0.0
        %757 = vmatpush2.msra.mxu0 0.0
        %758 = vmatprep.subr.mxu0 0.0
        %759 = vmatpush2.msra.mxu0 0.0
        %760 = vmatprep.subr.mxu0 0.0
        %761 = vmatpush2.msra.mxu0 0.0
        %762 = vmatprep.subr.mxu0 0.0
        %763 = vmatpush2.msra.mxu0 0.0
        %764 = vmatprep.subr.mxu0 0.0
        %765 = vmatpush2.msra.mxu0 0.0
        %766 = vmatprep.subr.mxu0 0.0
        %767 = vmatpush2.msra.mxu0 0.0
        %768 = vmatprep.subr.mxu0 0.0
        %769 = vmatpush2.msra.mxu0 0.0
        %770 = vmatprep.subr.mxu0 0.0
        %771 = vmatpush2.msra.mxu0 0.0
        %772 = vmatprep.subr.mxu0 0.0
        %773 = vmatpush2.msra.mxu0 0.0
        %774 = vmatprep.subr.mxu0 0.0
        %775 = vmatpush2.msra.mxu0 0.0
        %776 = vmatprep.subr.mxu0 0.0
        %777 = vmatpush2.msra.mxu0 0.0
        %778 = vmatprep.subr.mxu0 0.0
        %779 = vmatpush2.msra.mxu0 0.0
        %780 = vmatprep.subr.mxu0 0.0
        %781 = vmatpush2.msra.mxu0 0.0
        %782 = vmatprep.mubr.f32.mxu0 0.0
        %783 = vmatmul.mubr.f32.gmra.mxu0 %v609
        %v784 = vpop.f32.mrf.mxu0
        %v785 = vadd.f32 %v587, %v784
        %v786 = vpop.f32.mrf.mxu0
        %v787 = vadd.f32 %v589, %v786
        %788 = vmatprep.mubr.f32.mxu0 0.0
        %789 = vmatmul.mubr.f32.gmra.mxu0 %v611
        %v790 = vpop.f32.mrf.mxu0
        %v791 = vadd.f32 %v593, %v790
        %v792 = vpop.f32.mrf.mxu0
        %v793 = vadd.f32 %v595, %v792
        %794 = vmatprep.mubr.f32.mxu0 0.0
        %795 = vmatmul.mubr.f32.gmra.mxu0 %v613
        %v796 = vpop.f32.mrf.mxu0
        %v797 = vadd.f32 %v599, %v796
        %v798 = vpop.f32.mrf.mxu0
        %v799 = vadd.f32 %v601, %v798
        %800 = vmatprep.mubr.f32.mxu0 0.0
        %801 = vmatmul.mubr.f32.gmra.mxu0 %v615
        %v802 = vpop.f32.mrf.mxu0
        %v803 = vadd.f32 %v605, %v802
        %v804 = vpop.f32.mrf.mxu0
        %v805 = vadd.f32 %v607, %v804
        %806 = vdwg.mxu0
        %807 = vrot.lane.b32.xlu0 %v373, 120
        %v808 = vpop.permute.xlu0 %807
        %809 = vrot.lane.b32.xlu0 %v374, 120
        %v810 = vpop.permute.xlu0 %809
        %811 = vrot.lane.b32.xlu0 %v375, 120
        %v812 = vpop.permute.xlu0 %811
        %813 = vrot.lane.b32.xlu0 %v376, 120
        %v814 = vpop.permute.xlu0 %813
        %v815 = vrot.slane %v393, 4
        %v816 = vrot.slane %v394, 4
        %v817 = vrot.slane %v395, 4
        %v818 = vrot.slane %v396, 4
        %v819 = vsel %vm409, %v808, 0
        %v821 = vsel %vm409, %v810, 0
        %v823 = vsel %vm409, %v812, 0
        %v825 = vsel %vm409, %v814, 0
        %v827 = vsel %vm418, %v815, 0
        %v829 = vsel %vm418, %v816, 0
        %v831 = vsel %vm418, %v817, 0
        %v833 = vsel %vm418, %v818, 0
        %835 = vmatprep.subr.mxu0 0.0
        %836 = vmatpush1.msra.mxu0 0.0
        %837 = vmatprep.subr.mxu0 0.0
        %838 = vmatpush1.msra.mxu0 0.0
        %839 = vmatprep.subr.mxu0 0.0
        %840 = vmatpush1.msra.mxu0 0.0
        %841 = vmatprep.subr.mxu0 0.0
        %842 = vmatpush1.msra.mxu0 0.0
        %843 = vmatprep.subr.mxu0 0.0
        %844 = vmatpush1.msra.mxu0 0.0
        %845 = vmatprep.subr.mxu0 0.0
        %846 = vmatpush1.msra.mxu0 0.0
        %847 = vmatprep.subr.mxu0 0.0
        %848 = vmatpush1.msra.mxu0 0.0
        %849 = vmatprep.subr.mxu0 0.0
        %850 = vmatpush1.msra.mxu0 0.0
        %851 = vmatprep.subr.mxu0 0.0
        %852 = vmatpush1.msra.mxu0 0.0
        %853 = vmatprep.subr.mxu0 0.0
        %854 = vmatpush1.msra.mxu0 0.0
        %855 = vmatprep.subr.mxu0 0.0
        %856 = vmatpush1.msra.mxu0 0.0
        %857 = vmatprep.subr.mxu0 0.0
        %858 = vmatpush1.msra.mxu0 0.0
        %859 = vmatprep.subr.mxu0 0.0
        %860 = vmatpush1.msra.mxu0 0.0
        %861 = vmatprep.subr.mxu0 0.0
        %862 = vmatpush1.msra.mxu0 0.0
        %863 = vmatprep.subr.mxu0 0.0
        %864 = vmatpush1.msra.mxu0 0.0
        %865 = vmatprep.subr.mxu0 %v829
        %866 = vmatpush1.msra.mxu0 %v827
        %867 = vmatprep.subr.mxu0 0.0
        %868 = vmatpush2.msra.mxu0 0.0
        %869 = vmatprep.subr.mxu0 0.0
        %870 = vmatpush2.msra.mxu0 0.0
        %871 = vmatprep.subr.mxu0 0.0
        %872 = vmatpush2.msra.mxu0 0.0
        %873 = vmatprep.subr.mxu0 0.0
        %874 = vmatpush2.msra.mxu0 0.0
        %875 = vmatprep.subr.mxu0 0.0
        %876 = vmatpush2.msra.mxu0 0.0
        %877 = vmatprep.subr.mxu0 0.0
        %878 = vmatpush2.msra.mxu0 0.0
        %879 = vmatprep.subr.mxu0 0.0
        %880 = vmatpush2.msra.mxu0 0.0
        %881 = vmatprep.subr.mxu0 0.0
        %882 = vmatpush2.msra.mxu0 0.0
        %883 = vmatprep.subr.mxu0 0.0
        %884 = vmatpush2.msra.mxu0 0.0
        %885 = vmatprep.subr.mxu0 0.0
        %886 = vmatpush2.msra.mxu0 0.0
        %887 = vmatprep.subr.mxu0 0.0
        %888 = vmatpush2.msra.mxu0 0.0
        %889 = vmatprep.subr.mxu0 0.0
        %890 = vmatpush2.msra.mxu0 0.0
        %891 = vmatprep.subr.mxu0 0.0
        %892 = vmatpush2.msra.mxu0 0.0
        %893 = vmatprep.subr.mxu0 0.0
        %894 = vmatpush2.msra.mxu0 0.0
        %895 = vmatprep.subr.mxu0 0.0
        %896 = vmatpush2.msra.mxu0 0.0
        %897 = vmatprep.subr.mxu0 0.0
        %898 = vmatpush2.msra.mxu0 0.0
        %899 = vmatprep.mubr.f32.mxu0 0.0
        %900 = vmatmul.mubr.f32.gmra.mxu0 %v819
        %v901 = vpop.f32.mrf.mxu0
        %v902 = vadd.f32 0.0, %v901
        %v903 = vpop.f32.mrf.mxu0
        %v904 = vadd.f32 0.0, %v903
        %905 = vmatprep.mubr.f32.mxu0 0.0
        %906 = vmatmul.mubr.f32.gmra.mxu0 %v821
        %v907 = vpop.f32.mrf.mxu0
        %v908 = vadd.f32 0.0, %v907
        %v909 = vpop.f32.mrf.mxu0
        %v910 = vadd.f32 0.0, %v909
        %911 = vmatprep.mubr.f32.mxu0 0.0
        %912 = vmatmul.mubr.f32.gmra.mxu0 %v823
        %v913 = vpop.f32.mrf.mxu0
        %v914 = vadd.f32 0.0, %v913
        %v915 = vpop.f32.mrf.mxu0
        %v916 = vadd.f32 0.0, %v915
        %917 = vmatprep.mubr.f32.mxu0 0.0
        %918 = vmatmul.mubr.f32.gmra.mxu0 %v825
        %v919 = vpop.f32.mrf.mxu0
        %v920 = vadd.f32 0.0, %v919
        %v921 = vpop.f32.mrf.mxu0
        %v922 = vadd.f32 0.0, %v921
        %923 = vdwg.mxu0
        %924 = vmatprep.subr.mxu0 0.0
        %925 = vmatpush1.msra.mxu0 0.0
        %926 = vmatprep.subr.mxu0 0.0
        %927 = vmatpush1.msra.mxu0 0.0
        %928 = vmatprep.subr.mxu0 0.0
        %929 = vmatpush1.msra.mxu0 0.0
        %930 = vmatprep.subr.mxu0 0.0
        %931 = vmatpush1.msra.mxu0 0.0
        %932 = vmatprep.subr.mxu0 0.0
        %933 = vmatpush1.msra.mxu0 0.0
        %934 = vmatprep.subr.mxu0 0.0
        %935 = vmatpush1.msra.mxu0 0.0
        %936 = vmatprep.subr.mxu0 0.0
        %937 = vmatpush1.msra.mxu0 0.0
        %938 = vmatprep.subr.mxu0 0.0
        %939 = vmatpush1.msra.mxu0 0.0
        %940 = vmatprep.subr.mxu0 0.0
        %941 = vmatpush1.msra.mxu0 0.0
        %942 = vmatprep.subr.mxu0 0.0
        %943 = vmatpush1.msra.mxu0 0.0
        %944 = vmatprep.subr.mxu0 0.0
        %945 = vmatpush1.msra.mxu0 0.0
        %946 = vmatprep.subr.mxu0 0.0
        %947 = vmatpush1.msra.mxu0 0.0
        %948 = vmatprep.subr.mxu0 0.0
        %949 = vmatpush1.msra.mxu0 0.0
        %950 = vmatprep.subr.mxu0 0.0
        %951 = vmatpush1.msra.mxu0 0.0
        %952 = vmatprep.subr.mxu0 0.0
        %953 = vmatpush1.msra.mxu0 0.0
        %954 = vmatprep.subr.mxu0 %v833
        %955 = vmatpush1.msra.mxu0 %v831
        %956 = vmatprep.subr.mxu0 0.0
        %957 = vmatpush2.msra.mxu0 0.0
        %958 = vmatprep.subr.mxu0 0.0
        %959 = vmatpush2.msra.mxu0 0.0
        %960 = vmatprep.subr.mxu0 0.0
        %961 = vmatpush2.msra.mxu0 0.0
        %962 = vmatprep.subr.mxu0 0.0
        %963 = vmatpush2.msra.mxu0 0.0
        %964 = vmatprep.subr.mxu0 0.0
        %965 = vmatpush2.msra.mxu0 0.0
        %966 = vmatprep.subr.mxu0 0.0
        %967 = vmatpush2.msra.mxu0 0.0
        %968 = vmatprep.subr.mxu0 0.0
        %969 = vmatpush2.msra.mxu0 0.0
        %970 = vmatprep.subr.mxu0 0.0
        %971 = vmatpush2.msra.mxu0 0.0
        %972 = vmatprep.subr.mxu0 0.0
        %973 = vmatpush2.msra.mxu0 0.0
        %974 = vmatprep.subr.mxu0 0.0
        %975 = vmatpush2.msra.mxu0 0.0
        %976 = vmatprep.subr.mxu0 0.0
        %977 = vmatpush2.msra.mxu0 0.0
        %978 = vmatprep.subr.mxu0 0.0
        %979 = vmatpush2.msra.mxu0 0.0
        %980 = vmatprep.subr.mxu0 0.0
        %981 = vmatpush2.msra.mxu0 0.0
        %982 = vmatprep.subr.mxu0 0.0
        %983 = vmatpush2.msra.mxu0 0.0
        %984 = vmatprep.subr.mxu0 0.0
        %985 = vmatpush2.msra.mxu0 0.0
        %986 = vmatprep.subr.mxu0 0.0
        %987 = vmatpush2.msra.mxu0 0.0
        %988 = vmatprep.mubr.f32.mxu0 0.0
        %989 = vmatmul.mubr.f32.gmra.mxu0 %v819
        %v990 = vpop.f32.mrf.mxu0
        %v991 = vadd.f32 0.0, %v990
        %v992 = vpop.f32.mrf.mxu0
        %v993 = vadd.f32 0.0, %v992
        %994 = vmatprep.mubr.f32.mxu0 0.0
        %995 = vmatmul.mubr.f32.gmra.mxu0 %v821
        %v996 = vpop.f32.mrf.mxu0
        %v997 = vadd.f32 0.0, %v996
        %v998 = vpop.f32.mrf.mxu0
        %v999 = vadd.f32 0.0, %v998
        %1000 = vmatprep.mubr.f32.mxu0 0.0
        %1001 = vmatmul.mubr.f32.gmra.mxu0 %v823
        %v1002 = vpop.f32.mrf.mxu0
        %v1003 = vadd.f32 0.0, %v1002
        %v1004 = vpop.f32.mrf.mxu0
        %v1005 = vadd.f32 0.0, %v1004
        %1006 = vmatprep.mubr.f32.mxu0 0.0
        %1007 = vmatmul.mubr.f32.gmra.mxu0 %v825
        %v1008 = vpop.f32.mrf.mxu0
        %v1009 = vadd.f32 0.0, %v1008
        %v1010 = vpop.f32.mrf.mxu0
        %v1011 = vadd.f32 0.0, %v1010
        %1012 = vdwg.mxu0
        %v1013 = vadd.f32 %v696, %v902
        %v1014 = vadd.f32 %v698, %v904
        %v1015 = vadd.f32 %v785, %v991
        %v1016 = vadd.f32 %v787, %v993
        %v1017 = vadd.f32 %v702, %v908
        %v1018 = vadd.f32 %v704, %v910
        %v1019 = vadd.f32 %v791, %v997
        %v1020 = vadd.f32 %v793, %v999
        %v1021 = vadd.f32 %v708, %v914
        %v1022 = vadd.f32 %v710, %v916
        %v1023 = vadd.f32 %v797, %v1003
        %v1024 = vadd.f32 %v799, %v1005
        %v1025 = vadd.f32 %v714, %v920
        %v1026 = vadd.f32 %v716, %v922
        %v1027 = vadd.f32 %v803, %v1009
        %v1028 = vadd.f32 %v805, %v1011
        %1029 = vrot.lane.b32.xlu0 %v373, 116
        %v1030 = vpop.permute.xlu0 %1029
        %1031 = vrot.lane.b32.xlu0 %v374, 116
        %v1032 = vpop.permute.xlu0 %1031
        %1033 = vrot.lane.b32.xlu0 %v375, 116
        %v1034 = vpop.permute.xlu0 %1033
        %1035 = vrot.lane.b32.xlu0 %v376, 116
        %v1036 = vpop.permute.xlu0 %1035
        %v1037 = vrot.slane %v377, 4
        %v1038 = vrot.slane %v378, 4
        %v1039 = vrot.slane %v379, 4
        %v1040 = vrot.slane %v380, 4
        %v1041 = vsel %vm409, %v1030, 0
        %v1043 = vsel %vm409, %v1032, 0
        %v1045 = vsel %vm409, %v1034, 0
        %v1047 = vsel %vm409, %v1036, 0
        %v1049 = vsel %vm418, %v1037, 0
        %v1051 = vsel %vm418, %v1038, 0
        %v1053 = vsel %vm418, %v1039, 0
        %v1055 = vsel %vm418, %v1040, 0
        %1057 = vmatprep.subr.mxu0 0.0
        %1058 = vmatpush1.msra.mxu0 0.0
        %1059 = vmatprep.subr.mxu0 0.0
        %1060 = vmatpush1.msra.mxu0 0.0
        %1061 = vmatprep.subr.mxu0 0.0
        %1062 = vmatpush1.msra.mxu0 0.0
        %1063 = vmatprep.subr.mxu0 0.0
        %1064 = vmatpush1.msra.mxu0 0.0
        %1065 = vmatprep.subr.mxu0 0.0
        %1066 = vmatpush1.msra.mxu0 0.0
        %1067 = vmatprep.subr.mxu0 0.0
        %1068 = vmatpush1.msra.mxu0 0.0
        %1069 = vmatprep.subr.mxu0 0.0
        %1070 = vmatpush1.msra.mxu0 0.0
        %1071 = vmatprep.subr.mxu0 0.0
        %1072 = vmatpush1.msra.mxu0 0.0
        %1073 = vmatprep.subr.mxu0 0.0
        %1074 = vmatpush1.msra.mxu0 0.0
        %1075 = vmatprep.subr.mxu0 0.0
        %1076 = vmatpush1.msra.mxu0 0.0
        %1077 = vmatprep.subr.mxu0 0.0
        %1078 = vmatpush1.msra.mxu0 0.0
        %1079 = vmatprep.subr.mxu0 0.0
        %1080 = vmatpush1.msra.mxu0 0.0
        %1081 = vmatprep.subr.mxu0 0.0
        %1082 = vmatpush1.msra.mxu0 0.0
        %1083 = vmatprep.subr.mxu0 0.0
        %1084 = vmatpush1.msra.mxu0 0.0
        %1085 = vmatprep.subr.mxu0 0.0
        %1086 = vmatpush1.msra.mxu0 0.0
        %1087 = vmatprep.subr.mxu0 %v1051
        %1088 = vmatpush1.msra.mxu0 %v1049
        %1089 = vmatprep.subr.mxu0 0.0
        %1090 = vmatpush2.msra.mxu0 0.0
        %1091 = vmatprep.subr.mxu0 0.0
        %1092 = vmatpush2.msra.mxu0 0.0
        %1093 = vmatprep.subr.mxu0 0.0
        %1094 = vmatpush2.msra.mxu0 0.0
        %1095 = vmatprep.subr.mxu0 0.0
        %1096 = vmatpush2.msra.mxu0 0.0
        %1097 = vmatprep.subr.mxu0 0.0
        %1098 = vmatpush2.msra.mxu0 0.0
        %1099 = vmatprep.subr.mxu0 0.0
        %1100 = vmatpush2.msra.mxu0 0.0
        %1101 = vmatprep.subr.mxu0 0.0
        %1102 = vmatpush2.msra.mxu0 0.0
        %1103 = vmatprep.subr.mxu0 0.0
        %1104 = vmatpush2.msra.mxu0 0.0
        %1105 = vmatprep.subr.mxu0 0.0
        %1106 = vmatpush2.msra.mxu0 0.0
        %1107 = vmatprep.subr.mxu0 0.0
        %1108 = vmatpush2.msra.mxu0 0.0
        %1109 = vmatprep.subr.mxu0 0.0
        %1110 = vmatpush2.msra.mxu0 0.0
        %1111 = vmatprep.subr.mxu0 0.0
        %1112 = vmatpush2.msra.mxu0 0.0
        %1113 = vmatprep.subr.mxu0 0.0
        %1114 = vmatpush2.msra.mxu0 0.0
        %1115 = vmatprep.subr.mxu0 0.0
        %1116 = vmatpush2.msra.mxu0 0.0
        %1117 = vmatprep.subr.mxu0 0.0
        %1118 = vmatpush2.msra.mxu0 0.0
        %1119 = vmatprep.subr.mxu0 0.0
        %1120 = vmatpush2.msra.mxu0 0.0
        %1121 = vmatprep.mubr.f32.mxu0 0.0
        %1122 = vmatmul.mubr.f32.gmra.mxu0 %v1041
        %v1123 = vpop.f32.mrf.mxu0
        %v1124 = vadd.f32 0.0, %v1123
        %v1125 = vpop.f32.mrf.mxu0
        %v1126 = vadd.f32 0.0, %v1125
        %1127 = vmatprep.mubr.f32.mxu0 0.0
        %1128 = vmatmul.mubr.f32.gmra.mxu0 %v1043
        %v1129 = vpop.f32.mrf.mxu0
        %v1130 = vadd.f32 0.0, %v1129
        %v1131 = vpop.f32.mrf.mxu0
        %v1132 = vadd.f32 0.0, %v1131
        %1133 = vmatprep.mubr.f32.mxu0 0.0
        %1134 = vmatmul.mubr.f32.gmra.mxu0 %v1045
        %v1135 = vpop.f32.mrf.mxu0
        %v1136 = vadd.f32 0.0, %v1135
        %v1137 = vpop.f32.mrf.mxu0
        %v1138 = vadd.f32 0.0, %v1137
        %1139 = vmatprep.mubr.f32.mxu0 0.0
        %1140 = vmatmul.mubr.f32.gmra.mxu0 %v1047
        %v1141 = vpop.f32.mrf.mxu0
        %v1142 = vadd.f32 0.0, %v1141
        %v1143 = vpop.f32.mrf.mxu0
        %v1144 = vadd.f32 0.0, %v1143
        %1145 = vdwg.mxu0
        %1146 = vmatprep.subr.mxu0 0.0
        %1147 = vmatpush1.msra.mxu0 0.0
        %1148 = vmatprep.subr.mxu0 0.0
        %1149 = vmatpush1.msra.mxu0 0.0
        %1150 = vmatprep.subr.mxu0 0.0
        %1151 = vmatpush1.msra.mxu0 0.0
        %1152 = vmatprep.subr.mxu0 0.0
        %1153 = vmatpush1.msra.mxu0 0.0
        %1154 = vmatprep.subr.mxu0 0.0
        %1155 = vmatpush1.msra.mxu0 0.0
        %1156 = vmatprep.subr.mxu0 0.0
        %1157 = vmatpush1.msra.mxu0 0.0
        %1158 = vmatprep.subr.mxu0 0.0
        %1159 = vmatpush1.msra.mxu0 0.0
        %1160 = vmatprep.subr.mxu0 0.0
        %1161 = vmatpush1.msra.mxu0 0.0
        %1162 = vmatprep.subr.mxu0 0.0
        %1163 = vmatpush1.msra.mxu0 0.0
        %1164 = vmatprep.subr.mxu0 0.0
        %1165 = vmatpush1.msra.mxu0 0.0
        %1166 = vmatprep.subr.mxu0 0.0
        %1167 = vmatpush1.msra.mxu0 0.0
        %1168 = vmatprep.subr.mxu0 0.0
        %1169 = vmatpush1.msra.mxu0 0.0
        %1170 = vmatprep.subr.mxu0 0.0
        %1171 = vmatpush1.msra.mxu0 0.0
        %1172 = vmatprep.subr.mxu0 0.0
        %1173 = vmatpush1.msra.mxu0 0.0
        %1174 = vmatprep.subr.mxu0 0.0
        %1175 = vmatpush1.msra.mxu0 0.0
        %1176 = vmatprep.subr.mxu0 %v1055
        %1177 = vmatpush1.msra.mxu0 %v1053
        %1178 = vmatprep.subr.mxu0 0.0
        %1179 = vmatpush2.msra.mxu0 0.0
        %1180 = vmatprep.subr.mxu0 0.0
        %1181 = vmatpush2.msra.mxu0 0.0
        %1182 = vmatprep.subr.mxu0 0.0
        %1183 = vmatpush2.msra.mxu0 0.0
        %1184 = vmatprep.subr.mxu0 0.0
        %1185 = vmatpush2.msra.mxu0 0.0
        %1186 = vmatprep.subr.mxu0 0.0
        %1187 = vmatpush2.msra.mxu0 0.0
        %1188 = vmatprep.subr.mxu0 0.0
        %1189 = vmatpush2.msra.mxu0 0.0
        %1190 = vmatprep.subr.mxu0 0.0
        %1191 = vmatpush2.msra.mxu0 0.0
        %1192 = vmatprep.subr.mxu0 0.0
        %1193 = vmatpush2.msra.mxu0 0.0
        %1194 = vmatprep.subr.mxu0 0.0
        %1195 = vmatpush2.msra.mxu0 0.0
        %1196 = vmatprep.subr.mxu0 0.0
        %1197 = vmatpush2.msra.mxu0 0.0
        %1198 = vmatprep.subr.mxu0 0.0
        %1199 = vmatpush2.msra.mxu0 0.0
        %1200 = vmatprep.subr.mxu0 0.0
        %1201 = vmatpush2.msra.mxu0 0.0
        %1202 = vmatprep.subr.mxu0 0.0
        %1203 = vmatpush2.msra.mxu0 0.0
        %1204 = vmatprep.subr.mxu0 0.0
        %1205 = vmatpush2.msra.mxu0 0.0
        %1206 = vmatprep.subr.mxu0 0.0
        %1207 = vmatpush2.msra.mxu0 0.0
        %1208 = vmatprep.subr.mxu0 0.0
        %1209 = vmatpush2.msra.mxu0 0.0
        %1210 = vmatprep.mubr.f32.mxu0 0.0
        %1211 = vmatmul.mubr.f32.gmra.mxu0 %v1041
        %v1212 = vpop.f32.mrf.mxu0
        %v1213 = vadd.f32 0.0, %v1212
        %v1214 = vpop.f32.mrf.mxu0
        %v1215 = vadd.f32 0.0, %v1214
        %1216 = vmatprep.mubr.f32.mxu0 0.0
        %1217 = vmatmul.mubr.f32.gmra.mxu0 %v1043
        %v1218 = vpop.f32.mrf.mxu0
        %v1219 = vadd.f32 0.0, %v1218
        %v1220 = vpop.f32.mrf.mxu0
        %v1221 = vadd.f32 0.0, %v1220
        %1222 = vmatprep.mubr.f32.mxu0 0.0
        %1223 = vmatmul.mubr.f32.gmra.mxu0 %v1045
        %v1224 = vpop.f32.mrf.mxu0
        %v1225 = vadd.f32 0.0, %v1224
        %v1226 = vpop.f32.mrf.mxu0
        %v1227 = vadd.f32 0.0, %v1226
        %1228 = vmatprep.mubr.f32.mxu0 0.0
        %1229 = vmatmul.mubr.f32.gmra.mxu0 %v1047
        %v1230 = vpop.f32.mrf.mxu0
        %v1231 = vadd.f32 0.0, %v1230
        %v1232 = vpop.f32.mrf.mxu0
        %v1233 = vadd.f32 0.0, %v1232
        %1234 = vdwg.mxu0
        %v1235 = vadd.f32 %v1013, %v1124
        %v1236 = vadd.f32 %v1014, %v1126
        %v1237 = vadd.f32 %v1015, %v1213
        %v1238 = vadd.f32 %v1016, %v1215
        %v1239 = vadd.f32 %v1017, %v1130
        %v1240 = vadd.f32 %v1018, %v1132
        %v1241 = vadd.f32 %v1019, %v1219
        %v1242 = vadd.f32 %v1020, %v1221
        %v1243 = vadd.f32 %v1021, %v1136
        %v1244 = vadd.f32 %v1022, %v1138
        %v1245 = vadd.f32 %v1023, %v1225
        %v1246 = vadd.f32 %v1024, %v1227
        %v1247 = vadd.f32 %v1025, %v1142
        %v1248 = vadd.f32 %v1026, %v1144
        %v1249 = vadd.f32 %v1027, %v1231
        %v1250 = vadd.f32 %v1028, %v1233
        %v1251 = vld [vmem:[%s3] sm:$0xff]
        %v1252 = vld [vmem:[%s3 + $0x8] sm:$0xff]
        %v1253 = vld [vmem:[%s3 + $0x10] sm:$0xff]
        %v1254 = vld [vmem:[%s3 + $0x18] sm:$0xff]
        %1256 = vset.pattern.permute.xlu0 0
        %1257 = vperm.xlu0 %1256, %v1251
        %v1258 = vpop.permute.xlu0 %1257
        %1261 = vset.pattern.permute.xlu0 0
        %1262 = vperm.xlu0 %1261, %v1252
        %v1263 = vpop.permute.xlu0 %1262
        %1266 = vset.pattern.permute.xlu0 0
        %1267 = vperm.xlu0 %1266, %v1253
        %v1268 = vpop.permute.xlu0 %1267
        %1271 = vset.pattern.permute.xlu0 0
        %1272 = vperm.xlu0 %1271, %v1254
        %v1273 = vpop.permute.xlu0 %1272
        %v1275 = vadd.f32 %v1235, %v1258
        %v1276 = vadd.f32 %v1236, %v1258
        %v1277 = vadd.f32 %v1237, %v1258
        %v1278 = vadd.f32 %v1238, %v1258
        %v1279 = vadd.f32 %v1239, %v1263
        %v1280 = vadd.f32 %v1240, %v1263
        %v1281 = vadd.f32 %v1241, %v1263
        %v1282 = vadd.f32 %v1242, %v1263
        %v1283 = vadd.f32 %v1243, %v1268
        %v1284 = vadd.f32 %v1244, %v1268
        %v1285 = vadd.f32 %v1245, %v1268
        %v1286 = vadd.f32 %v1246, %v1268
        %v1287 = vadd.f32 %v1247, %v1273
        %v1288 = vadd.f32 %v1248, %v1273
        %v1289 = vadd.f32 %v1249, %v1273
        %v1290 = vadd.f32 %v1250, %v1273
        %v1291 = vmax.f32 %v1275, 0.0
        %v1292 = vmax.f32 %v1276, 0.0
        %v1293 = vmax.f32 %v1277, 0.0
        %v1294 = vmax.f32 %v1278, 0.0
        %v1295 = vmax.f32 %v1279, 0.0
        %v1296 = vmax.f32 %v1280, 0.0
        %v1297 = vmax.f32 %v1281, 0.0
        %v1298 = vmax.f32 %v1282, 0.0
        %v1299 = vmax.f32 %v1283, 0.0
        %v1300 = vmax.f32 %v1284, 0.0
        %v1301 = vmax.f32 %v1285, 0.0
        %v1302 = vmax.f32 %v1286, 0.0
        %v1303 = vmax.f32 %v1287, 0.0
        %v1304 = vmax.f32 %v1288, 0.0
        %v1305 = vmax.f32 %v1289, 0.0
        %v1306 = vmax.f32 %v1290, 0.0
        %v1307 = vld [vmem:[%s4] sm:$0xff]
        %v1308 = vld [vmem:[%s4 + $0x8] sm:$0xff]
        %v1309 = vld [vmem:[%s4 + $0x10] sm:$0xff]
        %v1310 = vld [vmem:[%s4 + $0x18] sm:$0xff]
        %v1311 = vld [vmem:[%s5] sm:$0xff]
        %v1312 = vld [vmem:[%s5 + $0x8] sm:$0xff]
        %v1313 = vld [vmem:[%s5 + $0x10] sm:$0xff]
        %v1314 = vld [vmem:[%s5 + $0x18] sm:$0xff]
        %1316 = vset.pattern.permute.xlu0 0
        %1317 = vperm.xlu0 %1316, %v1311
        %v1318 = vpop.permute.xlu0 %1317
        %1321 = vset.pattern.permute.xlu0 0
        %1322 = vperm.xlu0 %1321, %v1312
        %v1323 = vpop.permute.xlu0 %1322
        %1326 = vset.pattern.permute.xlu0 0
        %1327 = vperm.xlu0 %1326, %v1313
        %v1328 = vpop.permute.xlu0 %1327
        %1331 = vset.pattern.permute.xlu0 0
        %1332 = vperm.xlu0 %1331, %v1314
        %v1333 = vpop.permute.xlu0 %1332
        %vm1335 = vcmask 261120
        %v1337 = vsel %vm1335, %v1307, 0
        %v1340 = vsel %vm1335, %v1308, 0
        %v1343 = vsel %vm1335, %v1309, 0
        %v1346 = vsel %vm1335, %v1310, 0
        %1348 = vmatprep.subr.mxu0 0.0
        %1349 = vmatpush1.msra.mxu0 0.0
        %1350 = vmatprep.subr.mxu0 0.0
        %1351 = vmatpush1.msra.mxu0 0.0
        %1352 = vmatprep.subr.mxu0 0.0
        %1353 = vmatpush1.msra.mxu0 0.0
        %1354 = vmatprep.subr.mxu0 0.0
        %1355 = vmatpush1.msra.mxu0 0.0
        %1356 = vmatprep.subr.mxu0 0.0
        %1357 = vmatpush1.msra.mxu0 0.0
        %1358 = vmatprep.subr.mxu0 0.0
        %1359 = vmatpush1.msra.mxu0 0.0
        %1360 = vmatprep.subr.mxu0 0.0
        %1361 = vmatpush1.msra.mxu0 0.0
        %1362 = vmatprep.subr.mxu0 0.0
        %1363 = vmatpush1.msra.mxu0 0.0
        %1364 = vmatprep.subr.mxu0 0.0
        %1365 = vmatpush1.msra.mxu0 0.0
        %1366 = vmatprep.subr.mxu0 0.0
        %1367 = vmatpush1.msra.mxu0 0.0
        %1368 = vmatprep.subr.mxu0 0.0
        %1369 = vmatpush1.msra.mxu0 0.0
        %1370 = vmatprep.subr.mxu0 0.0
        %1371 = vmatpush1.msra.mxu0 0.0
        %1372 = vmatprep.subr.mxu0 %v1304
        %1373 = vmatpush1.msra.mxu0 %v1303
        %1374 = vmatprep.subr.mxu0 %v1300
        %1375 = vmatpush1.msra.mxu0 %v1299
        %1376 = vmatprep.subr.mxu0 %v1296
        %1377 = vmatpush1.msra.mxu0 %v1295
        %1378 = vmatprep.subr.mxu0 %v1292
        %1379 = vmatpush1.msra.mxu0 %v1291
        %1380 = vmatprep.subr.mxu0 0.0
        %1381 = vmatpush2.msra.mxu0 0.0
        %1382 = vmatprep.subr.mxu0 0.0
        %1383 = vmatpush2.msra.mxu0 0.0
        %1384 = vmatprep.subr.mxu0 0.0
        %1385 = vmatpush2.msra.mxu0 0.0
        %1386 = vmatprep.subr.mxu0 0.0
        %1387 = vmatpush2.msra.mxu0 0.0
        %1388 = vmatprep.subr.mxu0 0.0
        %1389 = vmatpush2.msra.mxu0 0.0
        %1390 = vmatprep.subr.mxu0 0.0
        %1391 = vmatpush2.msra.mxu0 0.0
        %1392 = vmatprep.subr.mxu0 0.0
        %1393 = vmatpush2.msra.mxu0 0.0
        %1394 = vmatprep.subr.mxu0 0.0
        %1395 = vmatpush2.msra.mxu0 0.0
        %1396 = vmatprep.subr.mxu0 0.0
        %1397 = vmatpush2.msra.mxu0 0.0
        %1398 = vmatprep.subr.mxu0 0.0
        %1399 = vmatpush2.msra.mxu0 0.0
        %1400 = vmatprep.subr.mxu0 0.0
        %1401 = vmatpush2.msra.mxu0 0.0
        %1402 = vmatprep.subr.mxu0 0.0
        %1403 = vmatpush2.msra.mxu0 0.0
        %1404 = vmatprep.subr.mxu0 0.0
        %1405 = vmatpush2.msra.mxu0 0.0
        %1406 = vmatprep.subr.mxu0 0.0
        %1407 = vmatpush2.msra.mxu0 0.0
        %1408 = vmatprep.subr.mxu0 0.0
        %1409 = vmatpush2.msra.mxu0 0.0
        %1410 = vmatprep.subr.mxu0 0.0
        %1411 = vmatpush2.msra.mxu0 0.0
        %1412 = vmatprep.mubr.f32.mxu0 0.0
        %1413 = vmatmul.mubr.f32.gmra.mxu0 %v1337
        %v1414 = vpop.f32.mrf.mxu0
        %v1415 = vadd.f32 %v1318, %v1414
        %v1416 = vpop.f32.mrf.mxu0
        %v1417 = vadd.f32 %v1318, %v1416
        %1418 = vmatprep.mubr.f32.mxu0 0.0
        %1419 = vmatmul.mubr.f32.gmra.mxu0 %v1340
        %v1420 = vpop.f32.mrf.mxu0
        %v1421 = vadd.f32 %v1323, %v1420
        %v1422 = vpop.f32.mrf.mxu0
        %v1423 = vadd.f32 %v1323, %v1422
        %1424 = vmatprep.mubr.f32.mxu0 0.0
        %1425 = vmatmul.mubr.f32.gmra.mxu0 %v1343
        %v1426 = vpop.f32.mrf.mxu0
        %v1427 = vadd.f32 %v1328, %v1426
        %v1428 = vpop.f32.mrf.mxu0
        %v1429 = vadd.f32 %v1328, %v1428
        %1430 = vmatprep.mubr.f32.mxu0 0.0
        %1431 = vmatmul.mubr.f32.gmra.mxu0 %v1346
        %v1432 = vpop.f32.mrf.mxu0
        %v1433 = vadd.f32 %v1333, %v1432
        %v1434 = vpop.f32.mrf.mxu0
        %v1435 = vadd.f32 %v1333, %v1434
        %1436 = vdwg.mxu0
        %1437 = vmatprep.subr.mxu0 0.0
        %1438 = vmatpush1.msra.mxu0 0.0
        %1439 = vmatprep.subr.mxu0 0.0
        %1440 = vmatpush1.msra.mxu0 0.0
        %1441 = vmatprep.subr.mxu0 0.0
        %1442 = vmatpush1.msra.mxu0 0.0
        %1443 = vmatprep.subr.mxu0 0.0
        %1444 = vmatpush1.msra.mxu0 0.0
        %1445 = vmatprep.subr.mxu0 0.0
        %1446 = vmatpush1.msra.mxu0 0.0
        %1447 = vmatprep.subr.mxu0 0.0
        %1448 = vmatpush1.msra.mxu0 0.0
        %1449 = vmatprep.subr.mxu0 0.0
        %1450 = vmatpush1.msra.mxu0 0.0
        %1451 = vmatprep.subr.mxu0 0.0
        %1452 = vmatpush1.msra.mxu0 0.0
        %1453 = vmatprep.subr.mxu0 0.0
        %1454 = vmatpush1.msra.mxu0 0.0
        %1455 = vmatprep.subr.mxu0 0.0
        %1456 = vmatpush1.msra.mxu0 0.0
        %1457 = vmatprep.subr.mxu0 0.0
        %1458 = vmatpush1.msra.mxu0 0.0
        %1459 = vmatprep.subr.mxu0 0.0
        %1460 = vmatpush1.msra.mxu0 0.0
        %1461 = vmatprep.subr.mxu0 %v1306
        %1462 = vmatpush1.msra.mxu0 %v1305
        %1463 = vmatprep.subr.mxu0 %v1302
        %1464 = vmatpush1.msra.mxu0 %v1301
        %1465 = vmatprep.subr.mxu0 %v1298
        %1466 = vmatpush1.msra.mxu0 %v1297
        %1467 = vmatprep.subr.mxu0 %v1294
        %1468 = vmatpush1.msra.mxu0 %v1293
        %1469 = vmatprep.subr.mxu0 0.0
        %1470 = vmatpush2.msra.mxu0 0.0
        %1471 = vmatprep.subr.mxu0 0.0
        %1472 = vmatpush2.msra.mxu0 0.0
        %1473 = vmatprep.subr.mxu0 0.0
        %1474 = vmatpush2.msra.mxu0 0.0
        %1475 = vmatprep.subr.mxu0 0.0
        %1476 = vmatpush2.msra.mxu0 0.0
        %1477 = vmatprep.subr.mxu0 0.0
        %1478 = vmatpush2.msra.mxu0 0.0
        %1479 = vmatprep.subr.mxu0 0.0
        %1480 = vmatpush2.msra.mxu0 0.0
        %1481 = vmatprep.subr.mxu0 0.0
        %1482 = vmatpush2.msra.mxu0 0.0
        %1483 = vmatprep.subr.mxu0 0.0
        %1484 = vmatpush2.msra.mxu0 0.0
        %1485 = vmatprep.subr.mxu0 0.0
        %1486 = vmatpush2.msra.mxu0 0.0
        %1487 = vmatprep.subr.mxu0 0.0
        %1488 = vmatpush2.msra.mxu0 0.0
        %1489 = vmatprep.subr.mxu0 0.0
        %1490 = vmatpush2.msra.mxu0 0.0
        %1491 = vmatprep.subr.mxu0 0.0
        %1492 = vmatpush2.msra.mxu0 0.0
        %1493 = vmatprep.subr.mxu0 0.0
        %1494 = vmatpush2.msra.mxu0 0.0
        %1495 = vmatprep.subr.mxu0 0.0
        %1496 = vmatpush2.msra.mxu0 0.0
        %1497 = vmatprep.subr.mxu0 0.0
        %1498 = vmatpush2.msra.mxu0 0.0
        %1499 = vmatprep.subr.mxu0 0.0
        %1500 = vmatpush2.msra.mxu0 0.0
        %1501 = vmatprep.mubr.f32.mxu0 0.0
        %1502 = vmatmul.mubr.f32.gmra.mxu0 %v1337
        %v1503 = vpop.f32.mrf.mxu0
        %v1504 = vadd.f32 %v1318, %v1503
        %v1505 = vpop.f32.mrf.mxu0
        %v1506 = vadd.f32 %v1318, %v1505
        %1507 = vmatprep.mubr.f32.mxu0 0.0
        %1508 = vmatmul.mubr.f32.gmra.mxu0 %v1340
        %v1509 = vpop.f32.mrf.mxu0
        %v1510 = vadd.f32 %v1323, %v1509
        %v1511 = vpop.f32.mrf.mxu0
        %v1512 = vadd.f32 %v1323, %v1511
        %1513 = vmatprep.mubr.f32.mxu0 0.0
        %1514 = vmatmul.mubr.f32.gmra.mxu0 %v1343
        %v1515 = vpop.f32.mrf.mxu0
        %v1516 = vadd.f32 %v1328, %v1515
        %v1517 = vpop.f32.mrf.mxu0
        %v1518 = vadd.f32 %v1328, %v1517
        %1519 = vmatprep.mubr.f32.mxu0 0.0
        %1520 = vmatmul.mubr.f32.gmra.mxu0 %v1346
        %v1521 = vpop.f32.mrf.mxu0
        %v1522 = vadd.f32 %v1333, %v1521
        %v1523 = vpop.f32.mrf.mxu0
        %v1524 = vadd.f32 %v1333, %v1523
        %1525 = vdwg.mxu0
        %v1526 = vmax.f32 %v1415, 0.0
        %v1527 = vmax.f32 %v1417, 0.0
        %v1528 = vmax.f32 %v1504, 0.0
        %v1529 = vmax.f32 %v1506, 0.0
        %v1530 = vmax.f32 %v1421, 0.0
        %v1531 = vmax.f32 %v1423, 0.0
        %v1532 = vmax.f32 %v1510, 0.0
        %v1533 = vmax.f32 %v1512, 0.0
        %v1534 = vmax.f32 %v1427, 0.0
        %v1535 = vmax.f32 %v1429, 0.0
        %v1536 = vmax.f32 %v1516, 0.0
        %v1537 = vmax.f32 %v1518, 0.0
        %v1538 = vmax.f32 %v1433, 0.0
        %v1539 = vmax.f32 %v1435, 0.0
        %v1540 = vmax.f32 %v1522, 0.0
        %v1541 = vmax.f32 %v1524, 0.0
        %v1542 = vld [vmem:[%s6] sm:$0x1]
        %v1543 = vld [vmem:[#allocation2] sm:$0x1]
        %1545 = vset.pattern.permute.xlu0 0
        %1546 = vperm.xlu0 %1545, %v1543
        %v1547 = vpop.permute.xlu0 %1546
        %v1549 = vlaneseq
        %v1550 = vshrl.u32 %v1549, 7
        %v1551 = vsub.s32 0, %v1550
        %v1552 = vrot.slane %v1547, %v1551
        %v1554 = vsel %vm1335, %v1542, 0
        %1556 = vmatprep.subr.mxu0 0.0
        %1557 = vmatpush1.msra.mxu0 0.0
        %1558 = vmatprep.subr.mxu0 0.0
        %1559 = vmatpush1.msra.mxu0 0.0
        %1560 = vmatprep.subr.mxu0 0.0
        %1561 = vmatpush1.msra.mxu0 0.0
        %1562 = vmatprep.subr.mxu0 0.0
        %1563 = vmatpush1.msra.mxu0 0.0
        %1564 = vmatprep.subr.mxu0 0.0
        %1565 = vmatpush1.msra.mxu0 0.0
        %1566 = vmatprep.subr.mxu0 0.0
        %1567 = vmatpush1.msra.mxu0 0.0
        %1568 = vmatprep.subr.mxu0 0.0
        %1569 = vmatpush1.msra.mxu0 0.0
        %1570 = vmatprep.subr.mxu0 0.0
        %1571 = vmatpush1.msra.mxu0 0.0
        %1572 = vmatprep.subr.mxu0 0.0
        %1573 = vmatpush1.msra.mxu0 0.0
        %1574 = vmatprep.subr.mxu0 0.0
        %1575 = vmatpush1.msra.mxu0 0.0
        %1576 = vmatprep.subr.mxu0 0.0
        %1577 = vmatpush1.msra.mxu0 0.0
        %1578 = vmatprep.subr.mxu0 0.0
        %1579 = vmatpush1.msra.mxu0 0.0
        %1580 = vmatprep.subr.mxu0 %v1539
        %1581 = vmatpush1.msra.mxu0 %v1538
        %1582 = vmatprep.subr.mxu0 %v1535
        %1583 = vmatpush1.msra.mxu0 %v1534
        %1584 = vmatprep.subr.mxu0 %v1531
        %1585 = vmatpush1.msra.mxu0 %v1530
        %1586 = vmatprep.subr.mxu0 %v1527
        %1587 = vmatpush1.msra.mxu0 %v1526
        %1588 = vmatprep.subr.mxu0 0.0
        %1589 = vmatpush2.msra.mxu0 0.0
        %1590 = vmatprep.subr.mxu0 0.0
        %1591 = vmatpush2.msra.mxu0 0.0
        %1592 = vmatprep.subr.mxu0 0.0
        %1593 = vmatpush2.msra.mxu0 0.0
        %1594 = vmatprep.subr.mxu0 0.0
        %1595 = vmatpush2.msra.mxu0 0.0
        %1596 = vmatprep.subr.mxu0 0.0
        %1597 = vmatpush2.msra.mxu0 0.0
        %1598 = vmatprep.subr.mxu0 0.0
        %1599 = vmatpush2.msra.mxu0 0.0
        %1600 = vmatprep.subr.mxu0 0.0
        %1601 = vmatpush2.msra.mxu0 0.0
        %1602 = vmatprep.subr.mxu0 0.0
        %1603 = vmatpush2.msra.mxu0 0.0
        %1604 = vmatprep.subr.mxu0 0.0
        %1605 = vmatpush2.msra.mxu0 0.0
        %1606 = vmatprep.subr.mxu0 0.0
        %1607 = vmatpush2.msra.mxu0 0.0
        %1608 = vmatprep.subr.mxu0 0.0
        %1609 = vmatpush2.msra.mxu0 0.0
        %1610 = vmatprep.subr.mxu0 0.0
        %1611 = vmatpush2.msra.mxu0 0.0
        %1612 = vmatprep.subr.mxu0 0.0
        %1613 = vmatpush2.msra.mxu0 0.0
        %1614 = vmatprep.subr.mxu0 0.0
        %1615 = vmatpush2.msra.mxu0 0.0
        %1616 = vmatprep.subr.mxu0 0.0
        %1617 = vmatpush2.msra.mxu0 0.0
        %1618 = vmatprep.subr.mxu0 0.0
        %1619 = vmatpush2.msra.mxu0 0.0
        %1620 = vmatprep.mubr.f32.mxu0 0.0
        %1621 = vmatmul.mubr.f32.gmra.mxu0 %v1554
        %v1622 = vpop.f32.mrf.mxu0
        %v1623 = vadd.f32 %v1552, %v1622
        %v1624 = vpop.f32.mrf.mxu0
        %v1625 = vadd.f32 %v1552, %v1624
        %1626 = vdwg.mxu0
        %1627 = vmatprep.subr.mxu0 0.0
        %1628 = vmatpush1.msra.mxu0 0.0
        %1629 = vmatprep.subr.mxu0 0.0
        %1630 = vmatpush1.msra.mxu0 0.0
        %1631 = vmatprep.subr.mxu0 0.0
        %1632 = vmatpush1.msra.mxu0 0.0
        %1633 = vmatprep.subr.mxu0 0.0
        %1634 = vmatpush1.msra.mxu0 0.0
        %1635 = vmatprep.subr.mxu0 0.0
        %1636 = vmatpush1.msra.mxu0 0.0
        %1637 = vmatprep.subr.mxu0 0.0
        %1638 = vmatpush1.msra.mxu0 0.0
        %1639 = vmatprep.subr.mxu0 0.0
        %1640 = vmatpush1.msra.mxu0 0.0
        %1641 = vmatprep.subr.mxu0 0.0
        %1642 = vmatpush1.msra.mxu0 0.0
        %1643 = vmatprep.subr.mxu0 0.0
        %1644 = vmatpush1.msra.mxu0 0.0
        %1645 = vmatprep.subr.mxu0 0.0
        %1646 = vmatpush1.msra.mxu0 0.0
        %1647 = vmatprep.subr.mxu0 0.0
        %1648 = vmatpush1.msra.mxu0 0.0
        %1649 = vmatprep.subr.mxu0 0.0
        %1650 = vmatpush1.msra.mxu0 0.0
        %1651 = vmatprep.subr.mxu0 %v1541
        %1652 = vmatpush1.msra.mxu0 %v1540
        %1653 = vmatprep.subr.mxu0 %v1537
        %1654 = vmatpush1.msra.mxu0 %v1536
        %1655 = vmatprep.subr.mxu0 %v1533
        %1656 = vmatpush1.msra.mxu0 %v1532
        %1657 = vmatprep.subr.mxu0 %v1529
        %1658 = vmatpush1.msra.mxu0 %v1528
        %1659 = vmatprep.subr.mxu0 0.0
        %1660 = vmatpush2.msra.mxu0 0.0
        %1661 = vmatprep.subr.mxu0 0.0
        %1662 = vmatpush2.msra.mxu0 0.0
        %1663 = vmatprep.subr.mxu0 0.0
        %1664 = vmatpush2.msra.mxu0 0.0
        %1665 = vmatprep.subr.mxu0 0.0
        %1666 = vmatpush2.msra.mxu0 0.0
        %1667 = vmatprep.subr.mxu0 0.0
        %1668 = vmatpush2.msra.mxu0 0.0
        %1669 = vmatprep.subr.mxu0 0.0
        %1670 = vmatpush2.msra.mxu0 0.0
        %1671 = vmatprep.subr.mxu0 0.0
        %1672 = vmatpush2.msra.mxu0 0.0
        %1673 = vmatprep.subr.mxu0 0.0
        %1674 = vmatpush2.msra.mxu0 0.0
        %1675 = vmatprep.subr.mxu0 0.0
        %1676 = vmatpush2.msra.mxu0 0.0
        %1677 = vmatprep.subr.mxu0 0.0
        %1678 = vmatpush2.msra.mxu0 0.0
        %1679 = vmatprep.subr.mxu0 0.0
        %1680 = vmatpush2.msra.mxu0 0.0
        %1681 = vmatprep.subr.mxu0 0.0
        %1682 = vmatpush2.msra.mxu0 0.0
        %1683 = vmatprep.subr.mxu0 0.0
        %1684 = vmatpush2.msra.mxu0 0.0
        %1685 = vmatprep.subr.mxu0 0.0
        %1686 = vmatpush2.msra.mxu0 0.0
        %1687 = vmatprep.subr.mxu0 0.0
        %1688 = vmatpush2.msra.mxu0 0.0
        %1689 = vmatprep.subr.mxu0 0.0
        %1690 = vmatpush2.msra.mxu0 0.0
        %1691 = vmatprep.mubr.f32.mxu0 0.0
        %1692 = vmatmul.mubr.f32.gmra.mxu0 %v1554
        %v1693 = vpop.f32.mrf.mxu0
        %v1694 = vadd.f32 %v1552, %v1693
        %v1695 = vpop.f32.mrf.mxu0
        %v1696 = vadd.f32 %v1552, %v1695
        %1697 = vdwg.mxu0
        %v1698 = vxor.u32 %v1623, 2147483648
        %v1699 = vxor.u32 %v1625, 2147483648
        %v1700 = vxor.u32 %v1694, 2147483648
        %v1701 = vxor.u32 %v1696, 2147483648
        %v1702 = vmul.f32 %v1698, 1.442695
        %v1703 = vpow.pop %v1702
        %v1704 = vmul.f32 %v1699, 1.442695
        %v1705 = vpow.pop %v1704
        %v1706 = vmul.f32 %v1700, 1.442695
        %v1707 = vpow.pop %v1706
        %v1708 = vmul.f32 %v1701, 1.442695
        %v1709 = vpow.pop %v1708
        %v1710 = vadd.f32 %v1703, 1.0
        %v1711 = vadd.f32 %v1705, 1.0
        %v1712 = vadd.f32 %v1707, 1.0
        %v1713 = vadd.f32 %v1709, 1.0
        %v1714 = vrcp.pop %v1710
        %v1715 = vmul.f32 1.0, %v1714
        %v1716 = vrcp.pop %v1711
        %v1717 = vmul.f32 1.0, %v1716
        %v1718 = vrcp.pop %v1712
        %v1719 = vmul.f32 1.0, %v1718
        %v1720 = vrcp.pop %v1713
        %v1721 = vmul.f32 1.0, %v1720
        %v1726 = vcombine.low %v1715, %v1717
        %v1727 = vcombine.low %v1719, %v1721
        %v1729 = vunpack.c.l.s4 1966171168
        %v1730 = vunpack.c.0.s8 %v1729
        %v1731 = vlaneseq
        %v1732 = vshrl.u32 %v1731, 7
        %v1733 = vsub.s32 %v1730, %v1732
        %v1734 = vrot.slane %v1726, %v1733
        %v1736 = vunpack.c.l.s4 1966171168
        %v1737 = vunpack.c.0.s8 %v1736
        %v1738 = vlaneseq
        %v1739 = vshrl.u32 %v1738, 7
        %v1740 = vsub.s32 %v1737, %v1739
        %v1741 = vrot.slane %v1727, %v1740
        %v1742 = vcombine.low %v1734, %v1741
        %v1744 = vunpack.c.l.s4 1966171168
        %v1745 = vunpack.c.0.s8 %v1744
        %v1746 = vlaneseq
        %v1747 = vshrl.u32 %v1746, 7
        %v1748 = vsub.s32 %v1745, %v1747
        %v1749 = vrot.slane %v1742, %v1748
        %v1751 = vlaneseq
        %vm1752 = vcmp.ge.s32.totalorder %v1751, 0
        %vm1753 = vcmp.lt.s32.totalorder %v1751, 512
        %vm1754 = vmand %vm1752, %vm1753
        %1755 = vst.msk [vmem:[%s361] sm:$0xf] %vm1754, %v1749
        %s1756 = sand.u32 %s216, 1
        %s1757 = scalar_lea.sflag [#allocation5], %s1756
        %s1758 = sand.u32 %s216, 1
        %s1759 = smul.addr %s1758, 4
        %s1760 = scalar_lea.vmem [#allocation8], %s1759
        // Predicated region
        $region61: #{tpu_custom_call.1} parent=51 // pred_check
          %p1761 = pneg %p226
        $region62: #{tpu_custom_call.1} parent=51 // pred_check_branch
          %1763 = sbr.rel (%p1761) target = $region64
        $region63: #{tpu_custom_call.1} parent=51 // pred_region
          %s1764 = smul.u32 4, %s30
          %s1766 = ssub.s32 64, 64
          %1767 = vsyncadd %s1757, %s1766
          %s1768 = smul.addr %s1764, 16
          %s1769 = scalar_lea.hbm %s8, %s1768
          %s1771 = sshll.u32 %s1760, 4
          %s1772 = int_to_ptr.vmem [resolvable:$true] %s1771
          %1774 = dma.vmem_to_hbm [thread:$0]  %s1772, 64, %s1769, %s1757
        $region64: #{tpu_custom_call.1} parent=51 // pred_fallthru
          _
      $region52: #{tpu_custom_call.1} parent=5 // pred_fallthru
        _
      %p1775 = scmp.le.s32.totalorder 2, %s25
      // Predicated region
      $region65: #{tpu_custom_call.1} parent=5 // pred_check
        %p1776 = pneg %p1775
      $region66: #{tpu_custom_call.1} parent=5 // pred_check_branch
        %1778 = sbr.rel (%p1776) target = $region68
      $region67: #{tpu_custom_call.1} parent=5 // pred_region
        %s1779 = ssub.s32 %s25, 2
        // Predicated region
        $region69: #{tpu_custom_call.1} parent=67 // pred_check
          %p1780 = pneg %p232
        $region70: #{tpu_custom_call.1} parent=67 // pred_check_branch
          %1782 = sbr.rel (%p1780) target = $region72
        $region71: #{tpu_custom_call.1} parent=67 // pred_region
          %s1783 = sand.u32 %s217, 1
          %s1784 = scalar_lea.sflag [#allocation5], %s1783
          %s1785 = sand.u32 %s217, 1
          %s1786 = smul.addr %s1785, 4
          %s1787 = scalar_lea.vmem [#allocation8], %s1786
          %1788 = dma.done %s1784, 64
        $region72: #{tpu_custom_call.1} parent=67 // pred_fallthru
          _
      $region68: #{tpu_custom_call.1} parent=5 // pred_fallthru
        _
    $region6: #{tpu_custom_call.1} parent=1 // loop_footer
      %s29 = sadd.s32 1, %s25
    $region7: #{tpu_custom_call.1} parent=1 // loop_footer_branch
      %24 = sbr.rel target = $region3
    $region8: #{tpu_custom_call.1} parent=1 // loop_exit
      _
    %1789 = vsyncpa [#allocation4], 1
    %s1790 = scalar_lea.sflag [#allocation4], 1
    %1791 = vsyncpa %s1790, 1
    %1792 = vsyncpa [#allocation7], 1
    %s1793 = scalar_lea.sflag [#allocation7], 1
    %1794 = vsyncpa %s1793, 1
    %1795 = vsyncpa [#allocation5], 1
    %s1796 = scalar_lea.sflag [#allocation5], 1
    %1797 = vsyncpa %s1796, 1

</llo_original>
